<compile_context>
chip_gen: v7x
topology: tpu7x:2x2x1
jax: 0.10.0
libtpu: 0.0.40
codegen_flags: <defaults>
</compile_context>

<pallas_src>
import math
import functools

import jax
import jax.numpy as jnp
from jax.experimental import pallas as pl
from jax.experimental.pallas import tpu as pltpu


def _aam_kernel(x_ref, wt_ref, lbl_ref, loss_ref, acc_ref,
                *, cos_m, sin_m, threshold, mm, scale, mxu_dtype):
    x = x_ref[...].astype(jnp.float32)        # (B, Dp)
    wt = wt_ref[...].astype(jnp.float32)      # (Dp, C)  -- weight pre-transposed
    lbl = lbl_ref[...]                        # (B, 1) int32

    # F.normalize(..., eps=1e-12):  v / max(||v||, eps)  ==  v * rsqrt(max(||v||^2, eps^2))
    eps2 = 1e-24
    x_n = x * jax.lax.rsqrt(jnp.maximum(jnp.sum(x * x, axis=1, keepdims=True), eps2))
    w_n = wt * jax.lax.rsqrt(jnp.maximum(jnp.sum(wt * wt, axis=0, keepdims=True), eps2))

    # cosine = x_n @ w_n  -> (B, C) on the MXU; RHS already (K, N), no transpose.
    cosine = jax.lax.dot_general(
        x_n.astype(mxu_dtype), w_n.astype(mxu_dtype),
        dimension_numbers=(((1,), (0,)), ((), ())),
        preferred_element_type=jnp.float32)

    B, C = cosine.shape
    cls_idx = jax.lax.broadcasted_iota(jnp.int32, (B, C), 1)
    is_tgt = cls_idx == lbl                                   # (B, C) one-hot mask

    # Margin math only on the target logit (per-row scalars).
    cos_t = jnp.sum(jnp.where(is_tgt, cosine, 0.0), axis=1, keepdims=True)   # (B, 1)
    sin_t = jnp.sqrt(jnp.clip(1.0 - cos_t * cos_t, 0.0, 1.0))
    phi_t = cos_t * cos_m - sin_t * sin_m
    phi_t = jnp.where(cos_t - threshold > 0, phi_t, cos_t - mm)

    # Logits: cosine everywhere, target column replaced by phi_t, then scaled.
    output = (cosine + jnp.where(is_tgt, phi_t - cos_t, 0.0)) * scale        # (B, C)

    # CrossEntropyLoss (mean reduction), numerically stable log-sum-exp.
    row_max = jnp.max(output, axis=1, keepdims=True)
    lse = row_max + jnp.log(jnp.sum(jnp.exp(output - row_max), axis=1, keepdims=True))
    loss_rows = lse - phi_t * scale                                          # (B, 1)
    loss_ref[0, 0] = jnp.sum(loss_rows) * (1.0 / float(B))

    # Top-1 accuracy (first index achieving the row max, like torch.topk).
    pred = jnp.min(jnp.where(output == row_max, cls_idx, C), axis=1, keepdims=True)
    correct = (pred == lbl).astype(jnp.float32)
    acc_ref[0, 0] = jnp.sum(correct) * (100.0 / float(B))


def aam_softmax_forward(x, weight, label, *, margin, scale,
                        mxu_dtype=jnp.bfloat16):
    """Returns (loss: scalar f32, accuracy: (1,) f32 in percent)."""
    B, D = x.shape
    C, D2 = weight.shape
    assert D == D2

    cos_m = math.cos(margin)
    sin_m = math.sin(margin)
    threshold = math.cos(math.pi - margin)
    mm = math.sin(math.pi - margin) * margin

    # Pad D to a multiple of 128 with zeros (layout-only; norms/dots unchanged).
    pad = (-D) % 128
    if pad:
        x = jnp.pad(x, ((0, 0), (0, pad)))
        weight = jnp.pad(weight, ((0, 0), (0, pad)))

    # Pre-transpose the weight so the MXU RHS is already (K, N).
    w_t = weight.T                                   # (D_pad, C)
    lbl2d = label.reshape(B, 1).astype(jnp.int32)

    kernel = functools.partial(
        _aam_kernel, cos_m=cos_m, sin_m=sin_m, threshold=threshold, mm=mm,
        scale=float(scale), mxu_dtype=mxu_dtype)

    loss, acc = pl.pallas_call(
        kernel,
        out_shape=(jax.ShapeDtypeStruct((1, 1), jnp.float32),
                   jax.ShapeDtypeStruct((1, 1), jnp.float32)),
        in_specs=[pl.BlockSpec(memory_space=pltpu.MemorySpace.VMEM),
                  pl.BlockSpec(memory_space=pltpu.MemorySpace.VMEM),
                  pl.BlockSpec(memory_space=pltpu.MemorySpace.VMEM)],
        out_specs=(pl.BlockSpec(memory_space=pltpu.MemorySpace.SMEM),
                   pl.BlockSpec(memory_space=pltpu.MemorySpace.SMEM)),
    )(x, w_t, lbl2d)

    return loss[0, 0], acc.reshape(1)


def _reference(x, weight, label, *, margin, scale):
    """Pure-JAX reference mirroring the PyTorch forward, for a sanity check."""
    cos_m, sin_m = math.cos(margin), math.sin(margin)
    th = math.cos(math.pi - margin)
    mm = math.sin(math.pi - margin) * margin
    x_n = x / jnp.maximum(jnp.linalg.norm(x, axis=1, keepdims=True), 1e-12)
    w_n = weight / jnp.maximum(jnp.linalg.norm(weight, axis=1, keepdims=True), 1e-12)
    cosine = x_n @ w_n.T
    sine = jnp.sqrt(jnp.clip(1.0 - cosine * cosine, 0.0, 1.0))
    phi = cosine * cos_m - sine * sin_m
    phi = jnp.where(cosine - th > 0, phi, cosine - mm)
    one_hot = jax.nn.one_hot(label, cosine.shape[1], dtype=jnp.float32)
    out = (one_hot * phi + (1.0 - one_hot) * cosine) * scale
    logp = jax.nn.log_softmax(out, axis=1)
    loss = -jnp.mean(jnp.sum(one_hot * logp, axis=1))
    acc = 100.0 * jnp.mean((jnp.argmax(out, axis=1) == label).astype(jnp.float32))
    return loss, acc


if __name__ == "__main__":
    n_class = 16
    feat_dim = 3000          # fixed by the module's weight shape (n_class, 3000)
    batch = 8
    margin = 0.2
    scale = 30

    key = jax.random.PRNGKey(0)
    kx, kw, kl = jax.random.split(key, 3)

    # Deterministic xavier-normal-style init: std = sqrt(2/(fan_in+fan_out))
    std = math.sqrt(2.0 / (n_class + feat_dim))
    weight = jax.random.normal(kw, (n_class, feat_dim), dtype=jnp.float32) * std
    x = jax.random.normal(kx, (batch, feat_dim), dtype=jnp.float32)
    label = jax.random.randint(kl, (batch,), 0, n_class, dtype=jnp.int32)

    ref_loss, ref_acc = _reference(x, weight, label, margin=margin, scale=scale)

    # 1) f32-MXU path: tight numerical check against the PyTorch-equivalent reference.
    loss32, acc32 = aam_softmax_forward(x, weight, label, margin=margin,
                                        scale=scale, mxu_dtype=jnp.float32)
    jax.block_until_ready((loss32, acc32))
    assert abs(float(loss32) - float(ref_loss)) < 1e-3, (float(loss32), float(ref_loss))
    assert abs(float(acc32[0]) - float(ref_acc)) < 1e-3, (float(acc32[0]), float(ref_acc))

    # 2) bf16-MXU path (default, per perf review): looser loss tolerance.
    loss_bf, acc_bf = aam_softmax_forward(x, weight, label, margin=margin, scale=scale)
    jax.block_until_ready((loss_bf, acc_bf))
    assert abs(float(loss_bf) - float(ref_loss)) < 1e-1, (float(loss_bf), float(ref_loss))
    assert 0.0 <= float(acc_bf[0]) <= 100.0

    print("KERNEL_OK")
</pallas_src>

<mosaic_0001>
module attributes {stable_mosaic.version = 11 : i64} {
  func.func @_aam_kernel(%arg0: memref<8x3072xf32, #tpu.memory_space<vmem>>, %arg1: memref<3072x16xf32, #tpu.memory_space<vmem>>, %arg2: memref<8x1xi32, #tpu.memory_space<vmem>>, %arg3: memref<1x1xf32, #tpu.memory_space<smem>>, %arg4: memref<1x1xf32, #tpu.memory_space<smem>>) attributes {dimension_semantics = [], scalar_prefetch = 0 : i64, scratch_operands = 0 : i64, tpu.core_type = #tpu.core_type<tc>} {
    %c0 = arith.constant 0 : index
    %c0_0 = arith.constant 0 : index
    %0 = vector.load %arg0[%c0, %c0_0] : memref<8x3072xf32, #tpu.memory_space<vmem>>, vector<8x3072xf32>
    %c0_1 = arith.constant 0 : index
    %c0_2 = arith.constant 0 : index
    %1 = vector.load %arg1[%c0_1, %c0_2] : memref<3072x16xf32, #tpu.memory_space<vmem>>, vector<3072x16xf32>
    %c0_3 = arith.constant 0 : index
    %c0_4 = arith.constant 0 : index
    %2 = vector.load %arg2[%c0_3, %c0_4] : memref<8x1xi32, #tpu.memory_space<vmem>>, vector<8x1xi32>
    %3 = arith.mulf %0, %0 : vector<8x3072xf32>
    %cst = arith.constant dense<0.000000e+00> : vector<8xf32>
    %4 = vector.multi_reduction <add>, %3, %cst [1] : vector<8x3072xf32> to vector<8xf32>
    %5 = vector.shape_cast %4 : vector<8xf32> to vector<8x1xf32>
    %cst_5 = arith.constant 1.000000e-24 : f32
    %6 = vector.broadcast %cst_5 : f32 to vector<8x1xf32>
    %7 = arith.maximumf %5, %6 : vector<8x1xf32>
    %8 = math.rsqrt %7 : vector<8x1xf32>
    %9 = vector.broadcast %8 : vector<8x1xf32> to vector<8x3072xf32>
    %10 = arith.mulf %0, %9 : vector<8x3072xf32>
    %11 = arith.mulf %1, %1 : vector<3072x16xf32>
    %cst_6 = arith.constant dense<0.000000e+00> : vector<16xf32>
    %12 = vector.multi_reduction <add>, %11, %cst_6 [0] : vector<3072x16xf32> to vector<16xf32>
    %13 = vector.shape_cast %12 : vector<16xf32> to vector<1x16xf32>
    %cst_7 = arith.constant 1.000000e-24 : f32
    %14 = vector.broadcast %cst_7 : f32 to vector<1x16xf32>
    %15 = arith.maximumf %13, %14 : vector<1x16xf32>
    %16 = math.rsqrt %15 : vector<1x16xf32>
    %17 = vector.broadcast %16 : vector<1x16xf32> to vector<3072x16xf32>
    %18 = arith.mulf %1, %17 : vector<3072x16xf32>
    %cst_8 = arith.constant dense<0.000000e+00> : vector<8x16xf32>
    %19 = tpu.matmul %10, %18, %cst_8 {dimension_numbers = #tpu.dot_dimension_numbers<[1], [0], [0], [1], [0, 0, 1, 1], [], []>} : vector<8x3072xf32>, vector<3072x16xf32>, vector<8x16xf32> -> vector<8x16xf32>
    %20 = tpu.iota {dimensions = array<i32: 1>} : vector<8x16xi32>
    %21 = vector.broadcast %2 : vector<8x1xi32> to vector<8x16xi32>
    %22 = arith.cmpi eq, %20, %21 : vector<8x16xi32>
    %cst_9 = arith.constant 0.000000e+00 : f32
    %23 = vector.broadcast %cst_9 : f32 to vector<8x16xf32>
    %24 = arith.select %22, %19, %23 : vector<8x16xi1>, vector<8x16xf32>
    %cst_10 = arith.constant dense<0.000000e+00> : vector<8xf32>
    %25 = vector.multi_reduction <add>, %24, %cst_10 [1] : vector<8x16xf32> to vector<8xf32>
    %26 = vector.shape_cast %25 : vector<8xf32> to vector<8x1xf32>
    %27 = arith.mulf %26, %26 : vector<8x1xf32>
    %cst_11 = arith.constant 1.000000e+00 : f32
    %28 = vector.broadcast %cst_11 : f32 to vector<8x1xf32>
    %29 = arith.subf %28, %27 : vector<8x1xf32>
    %cst_12 = arith.constant 0.000000e+00 : f32
    %cst_13 = arith.constant 1.000000e+00 : f32
    %30 = vector.broadcast %cst_12 : f32 to vector<8x1xf32>
    %31 = arith.maximumf %30, %29 : vector<8x1xf32>
    %32 = vector.broadcast %cst_13 : f32 to vector<8x1xf32>
    %33 = arith.minimumf %32, %31 : vector<8x1xf32>
    %34 = math.sqrt %33 : vector<8x1xf32>
    %cst_14 = arith.constant 0.980066597 : f32
    %35 = vector.broadcast %cst_14 : f32 to vector<8x1xf32>
    %36 = arith.mulf %26, %35 : vector<8x1xf32>
    %cst_15 = arith.constant 0.198669329 : f32
    %37 = vector.broadcast %cst_15 : f32 to vector<8x1xf32>
    %38 = arith.mulf %34, %37 : vector<8x1xf32>
    %39 = arith.subf %36, %38 : vector<8x1xf32>
    %cst_16 = arith.constant -0.980066597 : f32
    %40 = vector.broadcast %cst_16 : f32 to vector<8x1xf32>
    %41 = arith.subf %26, %40 : vector<8x1xf32>
    %cst_17 = arith.constant 0.000000e+00 : f32
    %42 = vector.broadcast %cst_17 : f32 to vector<8x1xf32>
    %43 = arith.cmpf ogt, %41, %42 : vector<8x1xf32>
    %cst_18 = arith.constant 0.0397338644 : f32
    %44 = vector.broadcast %cst_18 : f32 to vector<8x1xf32>
    %45 = arith.subf %26, %44 : vector<8x1xf32>
    %46 = arith.select %43, %39, %45 : vector<8x1xi1>, vector<8x1xf32>
    %47 = arith.subf %46, %26 : vector<8x1xf32>
    %cst_19 = arith.constant 0.000000e+00 : f32
    %48 = vector.shape_cast %47 : vector<8x1xf32> to vector<8x1xf32>
    %49 = vector.broadcast %48 : vector<8x1xf32> to vector<8x16xf32>
    %50 = vector.broadcast %cst_19 : f32 to vector<8x16xf32>
    %51 = arith.select %22, %49, %50 : vector<8x16xi1>, vector<8x16xf32>
    %52 = arith.addf %19, %51 : vector<8x16xf32>
    %cst_20 = arith.constant 3.000000e+01 : f32
    %53 = vector.broadcast %cst_20 : f32 to vector<8x16xf32>
    %54 = arith.mulf %52, %53 : vector<8x16xf32>
    %cst_21 = arith.constant dense<0xFF800000> : vector<8xf32>
    %55 = vector.multi_reduction <maximumf>, %54, %cst_21 [1] : vector<8x16xf32> to vector<8xf32>
    %56 = vector.shape_cast %55 : vector<8xf32> to vector<8x1xf32>
    %57 = vector.broadcast %56 : vector<8x1xf32> to vector<8x16xf32>
    %58 = arith.subf %54, %57 : vector<8x16xf32>
    %59 = math.exp %58 : vector<8x16xf32>
    %cst_22 = arith.constant dense<0.000000e+00> : vector<8xf32>
    %60 = vector.multi_reduction <add>, %59, %cst_22 [1] : vector<8x16xf32> to vector<8xf32>
    %61 = vector.shape_cast %60 : vector<8xf32> to vector<8x1xf32>
    %62 = math.log %61 : vector<8x1xf32>
    %63 = arith.addf %56, %62 : vector<8x1xf32>
    %cst_23 = arith.constant 3.000000e+01 : f32
    %64 = vector.broadcast %cst_23 : f32 to vector<8x1xf32>
    %65 = arith.mulf %46, %64 : vector<8x1xf32>
    %66 = arith.subf %63, %65 : vector<8x1xf32>
    %67 = vector.shape_cast %66 : vector<8x1xf32> to vector<1x8x1xf32>
    %cst_24 = arith.constant dense<0.000000e+00> : vector<1xf32>
    %68 = vector.multi_reduction <add>, %67, %cst_24 [1, 2] : vector<1x8x1xf32> to vector<1xf32>
    %69 = vector.shape_cast %68 : vector<1xf32> to vector<1x1x1xf32>
    %70 = vector.extract %69[0, 0, 0] : f32 from vector<1x1x1xf32>
    %cst_25 = arith.constant 1.250000e-01 : f32
    %71 = arith.mulf %70, %cst_25 : f32
    %c0_26 = arith.constant 0 : index
    %c0_27 = arith.constant 0 : index
    %72 = memref.load %arg3[%c0_26, %c0_27] : memref<1x1xf32, #tpu.memory_space<smem>>
    memref.store %71, %arg3[%c0_26, %c0_27] : memref<1x1xf32, #tpu.memory_space<smem>>
    %73 = vector.broadcast %56 : vector<8x1xf32> to vector<8x16xf32>
    %74 = arith.cmpf oeq, %54, %73 : vector<8x16xf32>
    %c16_i32 = arith.constant 16 : i32
    %75 = vector.broadcast %c16_i32 : i32 to vector<8x16xi32>
    %76 = arith.select %74, %20, %75 : vector<8x16xi1>, vector<8x16xi32>
    %cst_28 = arith.constant dense<2147483647> : vector<8xi32>
    %77 = vector.multi_reduction <minsi>, %76, %cst_28 [1] : vector<8x16xi32> to vector<8xi32>
    %78 = vector.shape_cast %77 : vector<8xi32> to vector<8x1xi32>
    %79 = arith.cmpi eq, %78, %2 : vector<8x1xi32>
    %80 = arith.extui %79 : vector<8x1xi1> to vector<8x1xi32>
    %81 = arith.sitofp %80 : vector<8x1xi32> to vector<8x1xf32>
    %82 = vector.shape_cast %81 : vector<8x1xf32> to vector<1x8x1xf32>
    %cst_29 = arith.constant dense<0.000000e+00> : vector<1xf32>
    %83 = vector.multi_reduction <add>, %82, %cst_29 [1, 2] : vector<1x8x1xf32> to vector<1xf32>
    %84 = vector.shape_cast %83 : vector<1xf32> to vector<1x1x1xf32>
    %85 = vector.extract %84[0, 0, 0] : f32 from vector<1x1x1xf32>
    %cst_30 = arith.constant 1.250000e+01 : f32
    %86 = arith.mulf %85, %cst_30 : f32
    %c0_31 = arith.constant 0 : index
    %c0_32 = arith.constant 0 : index
    %87 = memref.load %arg4[%c0_31, %c0_32] : memref<1x1xf32, #tpu.memory_space<smem>>
    memref.store %86, %arg4[%c0_31, %c0_32] : memref<1x1xf32, #tpu.memory_space<smem>>
    return
  }
}

</mosaic_0001>

<llo_original>
// kernel: tpu_custom_call.1
$region0: #{tpu_custom_call.1}
  #allocation0 [shape = 'u32[]', space=smem, size = 0x4, offset = 0x4, fixed_abs, tag = 'smem constant byte address 0x4 - core index']
  #allocation1 [shape = 'u32[144,128]{1,0:T(1,128)}', space=vmem, size = 0x12000, scoped, tag = 'internal scratch']
  %s0 = inlined_call_operand.vmem [shape: f32[8,3072], index: 0, kind: input, shape index: {}]
  %s1 = inlined_call_operand.vmem [shape: f32[3072,16], index: 1, kind: input, shape index: {}]
  %s2 = inlined_call_operand.vmem [shape: s32[8,1], index: 2, kind: input, shape index: {}]
  %s3 = inlined_call_operand.hbm [shape: f32[1,1], index: 3, kind: output, shape index: {0}]
  %s4 = inlined_call_operand.hbm [shape: f32[1,1], index: 4, kind: output, shape index: {1}]
  %5 = xla_tuple %s3, %s4
  %s6 = sld [smem:[#allocation0]]
  $region30: #{tpu_custom_call.1} parent=0
    _
  %s8 = ssub.s32 1, %s6
  %s9 = scalar_select 0, %s8, %s6
  $region1: #{tpu_custom_call.1} parent=0
    #allocation2 [shape = 'u8[512]{0}', space=smem, size = 0x200, scoped, tag = 'output window, operand 0, single buffered']
    #allocation3 [shape = 's32[1]{0}', space=sflag, size = 0x4, scoped, tag = 'scoped memory for tpu_custom_call.1']
    #allocation4 [shape = 'u8[512]{0}', space=smem, size = 0x200, scoped, tag = 'output window, operand 1, single buffered']
    #allocation5 [shape = 's32[1]{0}', space=sflag, size = 0x4, scoped, tag = 'scoped memory for tpu_custom_call.1']
    %10 = vsyncpa [#allocation3], 0
    %11 = vsyncpa [#allocation5], 0
    // Predicated region
    $region2: #{tpu_custom_call.1} parent=1 // pred_check
      _
    $region3: #{tpu_custom_call.1} parent=1 // pred_check_branch
      %13 = sbr.rel (0) target = $region5
    $region4: #{tpu_custom_call.1} parent=1 // pred_region
      _
    $region5: #{tpu_custom_call.1} parent=1 // pred_fallthru
      _
    // Predicated region
    $region6: #{tpu_custom_call.1} parent=1 // pred_check
      _
    $region7: #{tpu_custom_call.1} parent=1 // pred_check_branch
      %15 = sbr.rel (0) target = $region9
    $region8: #{tpu_custom_call.1} parent=1 // pred_region
      _
    $region9: #{tpu_custom_call.1} parent=1 // pred_fallthru
      _
    // Predicated region
    $region10: #{tpu_custom_call.1} parent=1 // pred_check
      _
    $region11: #{tpu_custom_call.1} parent=1 // pred_check_branch
      %17 = sbr.rel (0) target = $region13
    $region12: #{tpu_custom_call.1} parent=1 // pred_region
      _
    $region13: #{tpu_custom_call.1} parent=1 // pred_fallthru
      _
    %v18 = vld [vmem:[%s0] sm:$0xff]
    %v19 = vld [vmem:[%s0 + $0x8] sm:$0xff]
    %v20 = vld [vmem:[%s0 + $0x10] sm:$0xff]
    %v21 = vld [vmem:[%s0 + $0x18] sm:$0xff]
    %v22 = vld [vmem:[%s0 + $0x20] sm:$0xff]
    %v23 = vld [vmem:[%s0 + $0x28] sm:$0xff]
    %v24 = vld [vmem:[%s0 + $0x30] sm:$0xff]
    %v25 = vld [vmem:[%s0 + $0x38] sm:$0xff]
    %v26 = vld [vmem:[%s0 + $0x40] sm:$0xff]
    %v27 = vld [vmem:[%s0 + $0x48] sm:$0xff]
    %v28 = vld [vmem:[%s0 + $0x50] sm:$0xff]
    %v29 = vld [vmem:[%s0 + $0x58] sm:$0xff]
    %v30 = vld [vmem:[%s0 + $0x60] sm:$0xff]
    %v31 = vld [vmem:[%s0 + $0x68] sm:$0xff]
    %v32 = vld [vmem:[%s0 + $0x70] sm:$0xff]
    %v33 = vld [vmem:[%s0 + $0x78] sm:$0xff]
    %v34 = vld [vmem:[%s0 + $0x80] sm:$0xff]
    %v35 = vld [vmem:[%s0 + $0x88] sm:$0xff]
    %v36 = vld [vmem:[%s0 + $0x90] sm:$0xff]
    %v37 = vld [vmem:[%s0 + $0x98] sm:$0xff]
    %v38 = vld [vmem:[%s0 + $0xa0] sm:$0xff]
    %v39 = vld [vmem:[%s0 + $0xa8] sm:$0xff]
    %v40 = vld [vmem:[%s0 + $0xb0] sm:$0xff]
    %v41 = vld [vmem:[%s0 + $0xb8] sm:$0xff]
    %v42 = vld [vmem:[%s1] sm:$0xff]
    %v43 = vld [vmem:[%s1 + $0x8] sm:$0xff]
    %v44 = vld [vmem:[%s1 + $0x10] sm:$0xff]
    %v45 = vld [vmem:[%s1 + $0x18] sm:$0xff]
    %v46 = vld [vmem:[%s1 + $0x20] sm:$0xff]
    %v47 = vld [vmem:[%s1 + $0x28] sm:$0xff]
    %v48 = vld [vmem:[%s1 + $0x30] sm:$0xff]
    %v49 = vld [vmem:[%s1 + $0x38] sm:$0xff]
    %v50 = vld [vmem:[%s1 + $0x40] sm:$0xff]
    %v51 = vld [vmem:[%s1 + $0x48] sm:$0xff]
    %v52 = vld [vmem:[%s1 + $0x50] sm:$0xff]
    %v53 = vld [vmem:[%s1 + $0x58] sm:$0xff]
    %v54 = vld [vmem:[%s1 + $0x60] sm:$0xff]
    %v55 = vld [vmem:[%s1 + $0x68] sm:$0xff]
    %v56 = vld [vmem:[%s1 + $0x70] sm:$0xff]
    %v57 = vld [vmem:[%s1 + $0x78] sm:$0xff]
    %v58 = vld [vmem:[%s1 + $0x80] sm:$0xff]
    %v59 = vld [vmem:[%s1 + $0x88] sm:$0xff]
    %v60 = vld [vmem:[%s1 + $0x90] sm:$0xff]
    %v61 = vld [vmem:[%s1 + $0x98] sm:$0xff]
    %v62 = vld [vmem:[%s1 + $0xa0] sm:$0xff]
    %v63 = vld [vmem:[%s1 + $0xa8] sm:$0xff]
    %v64 = vld [vmem:[%s1 + $0xb0] sm:$0xff]
    %v65 = vld [vmem:[%s1 + $0xb8] sm:$0xff]
    %v66 = vld [vmem:[%s1 + $0xc0] sm:$0xff]
    %v67 = vld [vmem:[%s1 + $0xc8] sm:$0xff]
    %v68 = vld [vmem:[%s1 + $0xd0] sm:$0xff]
    %v69 = vld [vmem:[%s1 + $0xd8] sm:$0xff]
    %v70 = vld [vmem:[%s1 + $0xe0] sm:$0xff]
    %v71 = vld [vmem:[%s1 + $0xe8] sm:$0xff]
    %v72 = vld [vmem:[%s1 + $0xf0] sm:$0xff]
    %v73 = vld [vmem:[%s1 + $0xf8] sm:$0xff]
    %v74 = vld [vmem:[%s1 + $0x100] sm:$0xff]
    %v75 = vld [vmem:[%s1 + $0x108] sm:$0xff]
    %v76 = vld [vmem:[%s1 + $0x110] sm:$0xff]
    %v77 = vld [vmem:[%s1 + $0x118] sm:$0xff]
    %v78 = vld [vmem:[%s1 + $0x120] sm:$0xff]
    %v79 = vld [vmem:[%s1 + $0x128] sm:$0xff]
    %v80 = vld [vmem:[%s1 + $0x130] sm:$0xff]
    %v81 = vld [vmem:[%s1 + $0x138] sm:$0xff]
    %v82 = vld [vmem:[%s1 + $0x140] sm:$0xff]
    %v83 = vld [vmem:[%s1 + $0x148] sm:$0xff]
    %v84 = vld [vmem:[%s1 + $0x150] sm:$0xff]
    %v85 = vld [vmem:[%s1 + $0x158] sm:$0xff]
    %v86 = vld [vmem:[%s1 + $0x160] sm:$0xff]
    %v87 = vld [vmem:[%s1 + $0x168] sm:$0xff]
    %v88 = vld [vmem:[%s1 + $0x170] sm:$0xff]
    %v89 = vld [vmem:[%s1 + $0x178] sm:$0xff]
    %v90 = vld [vmem:[%s1 + $0x180] sm:$0xff]
    %v91 = vld [vmem:[%s1 + $0x188] sm:$0xff]
    %v92 = vld [vmem:[%s1 + $0x190] sm:$0xff]
    %v93 = vld [vmem:[%s1 + $0x198] sm:$0xff]
    %v94 = vld [vmem:[%s1 + $0x1a0] sm:$0xff]
    %v95 = vld [vmem:[%s1 + $0x1a8] sm:$0xff]
    %v96 = vld [vmem:[%s1 + $0x1b0] sm:$0xff]
    %v97 = vld [vmem:[%s1 + $0x1b8] sm:$0xff]
    %v98 = vld [vmem:[%s1 + $0x1c0] sm:$0xff]
    %v99 = vld [vmem:[%s1 + $0x1c8] sm:$0xff]
    %v100 = vld [vmem:[%s1 + $0x1d0] sm:$0xff]
    %v101 = vld [vmem:[%s1 + $0x1d8] sm:$0xff]
    %v102 = vld [vmem:[%s1 + $0x1e0] sm:$0xff]
    %v103 = vld [vmem:[%s1 + $0x1e8] sm:$0xff]
    %v104 = vld [vmem:[%s1 + $0x1f0] sm:$0xff]
    %v105 = vld [vmem:[%s1 + $0x1f8] sm:$0xff]
    %v106 = vld [vmem:[%s1 + $0x200] sm:$0xff]
    %v107 = vld [vmem:[%s1 + $0x208] sm:$0xff]
    %v108 = vld [vmem:[%s1 + $0x210] sm:$0xff]
    %v109 = vld [vmem:[%s1 + $0x218] sm:$0xff]
    %v110 = vld [vmem:[%s1 + $0x220] sm:$0xff]
    %v111 = vld [vmem:[%s1 + $0x228] sm:$0xff]
    %v112 = vld [vmem:[%s1 + $0x230] sm:$0xff]
    %v113 = vld [vmem:[%s1 + $0x238] sm:$0xff]
    %v114 = vld [vmem:[%s1 + $0x240] sm:$0xff]
    %v115 = vld [vmem:[%s1 + $0x248] sm:$0xff]
    %v116 = vld [vmem:[%s1 + $0x250] sm:$0xff]
    %v117 = vld [vmem:[%s1 + $0x258] sm:$0xff]
    %v118 = vld [vmem:[%s1 + $0x260] sm:$0xff]
    %v119 = vld [vmem:[%s1 + $0x268] sm:$0xff]
    %v120 = vld [vmem:[%s1 + $0x270] sm:$0xff]
    %v121 = vld [vmem:[%s1 + $0x278] sm:$0xff]
    %v122 = vld [vmem:[%s1 + $0x280] sm:$0xff]
    %v123 = vld [vmem:[%s1 + $0x288] sm:$0xff]
    %v124 = vld [vmem:[%s1 + $0x290] sm:$0xff]
    %v125 = vld [vmem:[%s1 + $0x298] sm:$0xff]
    %v126 = vld [vmem:[%s1 + $0x2a0] sm:$0xff]
    %v127 = vld [vmem:[%s1 + $0x2a8] sm:$0xff]
    %v128 = vld [vmem:[%s1 + $0x2b0] sm:$0xff]
    %v129 = vld [vmem:[%s1 + $0x2b8] sm:$0xff]
    %v130 = vld [vmem:[%s1 + $0x2c0] sm:$0xff]
    %v131 = vld [vmem:[%s1 + $0x2c8] sm:$0xff]
    %v132 = vld [vmem:[%s1 + $0x2d0] sm:$0xff]
    %v133 = vld [vmem:[%s1 + $0x2d8] sm:$0xff]
    %v134 = vld [vmem:[%s1 + $0x2e0] sm:$0xff]
    %v135 = vld [vmem:[%s1 + $0x2e8] sm:$0xff]
    %v136 = vld [vmem:[%s1 + $0x2f0] sm:$0xff]
    %v137 = vld [vmem:[%s1 + $0x2f8] sm:$0xff]
    %v138 = vld [vmem:[%s1 + $0x300] sm:$0xff]
    %v139 = vld [vmem:[%s1 + $0x308] sm:$0xff]
    %v140 = vld [vmem:[%s1 + $0x310] sm:$0xff]
    %v141 = vld [vmem:[%s1 + $0x318] sm:$0xff]
    %v142 = vld [vmem:[%s1 + $0x320] sm:$0xff]
    %v143 = vld [vmem:[%s1 + $0x328] sm:$0xff]
    %v144 = vld [vmem:[%s1 + $0x330] sm:$0xff]
    %v145 = vld [vmem:[%s1 + $0x338] sm:$0xff]
    %v146 = vld [vmem:[%s1 + $0x340] sm:$0xff]
    %v147 = vld [vmem:[%s1 + $0x348] sm:$0xff]
    %v148 = vld [vmem:[%s1 + $0x350] sm:$0xff]
    %v149 = vld [vmem:[%s1 + $0x358] sm:$0xff]
    %v150 = vld [vmem:[%s1 + $0x360] sm:$0xff]
    %v151 = vld [vmem:[%s1 + $0x368] sm:$0xff]
    %v152 = vld [vmem:[%s1 + $0x370] sm:$0xff]
    %v153 = vld [vmem:[%s1 + $0x378] sm:$0xff]
    %v154 = vld [vmem:[%s1 + $0x380] sm:$0xff]
    %v155 = vld [vmem:[%s1 + $0x388] sm:$0xff]
    %v156 = vld [vmem:[%s1 + $0x390] sm:$0xff]
    %v157 = vld [vmem:[%s1 + $0x398] sm:$0xff]
    %v158 = vld [vmem:[%s1 + $0x3a0] sm:$0xff]
    %v159 = vld [vmem:[%s1 + $0x3a8] sm:$0xff]
    %v160 = vld [vmem:[%s1 + $0x3b0] sm:$0xff]
    %v161 = vld [vmem:[%s1 + $0x3b8] sm:$0xff]
    %v162 = vld [vmem:[%s1 + $0x3c0] sm:$0xff]
    %v163 = vld [vmem:[%s1 + $0x3c8] sm:$0xff]
    %v164 = vld [vmem:[%s1 + $0x3d0] sm:$0xff]
    %v165 = vld [vmem:[%s1 + $0x3d8] sm:$0xff]
    %v166 = vld [vmem:[%s1 + $0x3e0] sm:$0xff]
    %v167 = vld [vmem:[%s1 + $0x3e8] sm:$0xff]
    %v168 = vld [vmem:[%s1 + $0x3f0] sm:$0xff]
    %v169 = vld [vmem:[%s1 + $0x3f8] sm:$0xff]
    %v170 = vld [vmem:[%s1 + $0x400] sm:$0xff]
    %v171 = vld [vmem:[%s1 + $0x408] sm:$0xff]
    %v172 = vld [vmem:[%s1 + $0x410] sm:$0xff]
    %v173 = vld [vmem:[%s1 + $0x418] sm:$0xff]
    %v174 = vld [vmem:[%s1 + $0x420] sm:$0xff]
    %v175 = vld [vmem:[%s1 + $0x428] sm:$0xff]
    %v176 = vld [vmem:[%s1 + $0x430] sm:$0xff]
    %v177 = vld [vmem:[%s1 + $0x438] sm:$0xff]
    %v178 = vld [vmem:[%s1 + $0x440] sm:$0xff]
    %v179 = vld [vmem:[%s1 + $0x448] sm:$0xff]
    %v180 = vld [vmem:[%s1 + $0x450] sm:$0xff]
    %v181 = vld [vmem:[%s1 + $0x458] sm:$0xff]
    %v182 = vld [vmem:[%s1 + $0x460] sm:$0xff]
    %v183 = vld [vmem:[%s1 + $0x468] sm:$0xff]
    %v184 = vld [vmem:[%s1 + $0x470] sm:$0xff]
    %v185 = vld [vmem:[%s1 + $0x478] sm:$0xff]
    %v186 = vld [vmem:[%s1 + $0x480] sm:$0xff]
    %v187 = vld [vmem:[%s1 + $0x488] sm:$0xff]
    %v188 = vld [vmem:[%s1 + $0x490] sm:$0xff]
    %v189 = vld [vmem:[%s1 + $0x498] sm:$0xff]
    %v190 = vld [vmem:[%s1 + $0x4a0] sm:$0xff]
    %v191 = vld [vmem:[%s1 + $0x4a8] sm:$0xff]
    %v192 = vld [vmem:[%s1 + $0x4b0] sm:$0xff]
    %v193 = vld [vmem:[%s1 + $0x4b8] sm:$0xff]
    %v194 = vld [vmem:[%s1 + $0x4c0] sm:$0xff]
    %v195 = vld [vmem:[%s1 + $0x4c8] sm:$0xff]
    %v196 = vld [vmem:[%s1 + $0x4d0] sm:$0xff]
    %v197 = vld [vmem:[%s1 + $0x4d8] sm:$0xff]
    %v198 = vld [vmem:[%s1 + $0x4e0] sm:$0xff]
    %v199 = vld [vmem:[%s1 + $0x4e8] sm:$0xff]
    %v200 = vld [vmem:[%s1 + $0x4f0] sm:$0xff]
    %v201 = vld [vmem:[%s1 + $0x4f8] sm:$0xff]
    %v202 = vld [vmem:[%s1 + $0x500] sm:$0xff]
    %v203 = vld [vmem:[%s1 + $0x508] sm:$0xff]
    %v204 = vld [vmem:[%s1 + $0x510] sm:$0xff]
    %v205 = vld [vmem:[%s1 + $0x518] sm:$0xff]
    %v206 = vld [vmem:[%s1 + $0x520] sm:$0xff]
    %v207 = vld [vmem:[%s1 + $0x528] sm:$0xff]
    %v208 = vld [vmem:[%s1 + $0x530] sm:$0xff]
    %v209 = vld [vmem:[%s1 + $0x538] sm:$0xff]
    %v210 = vld [vmem:[%s1 + $0x540] sm:$0xff]
    %v211 = vld [vmem:[%s1 + $0x548] sm:$0xff]
    %v212 = vld [vmem:[%s1 + $0x550] sm:$0xff]
    %v213 = vld [vmem:[%s1 + $0x558] sm:$0xff]
    %v214 = vld [vmem:[%s1 + $0x560] sm:$0xff]
    %v215 = vld [vmem:[%s1 + $0x568] sm:$0xff]
    %v216 = vld [vmem:[%s1 + $0x570] sm:$0xff]
    %v217 = vld [vmem:[%s1 + $0x578] sm:$0xff]
    %v218 = vld [vmem:[%s1 + $0x580] sm:$0xff]
    %v219 = vld [vmem:[%s1 + $0x588] sm:$0xff]
    %v220 = vld [vmem:[%s1 + $0x590] sm:$0xff]
    %v221 = vld [vmem:[%s1 + $0x598] sm:$0xff]
    %v222 = vld [vmem:[%s1 + $0x5a0] sm:$0xff]
    %v223 = vld [vmem:[%s1 + $0x5a8] sm:$0xff]
    %v224 = vld [vmem:[%s1 + $0x5b0] sm:$0xff]
    %v225 = vld [vmem:[%s1 + $0x5b8] sm:$0xff]
    %v226 = vld [vmem:[%s1 + $0x5c0] sm:$0xff]
    %v227 = vld [vmem:[%s1 + $0x5c8] sm:$0xff]
    %v228 = vld [vmem:[%s1 + $0x5d0] sm:$0xff]
    %v229 = vld [vmem:[%s1 + $0x5d8] sm:$0xff]
    %v230 = vld [vmem:[%s1 + $0x5e0] sm:$0xff]
    %v231 = vld [vmem:[%s1 + $0x5e8] sm:$0xff]
    %v232 = vld [vmem:[%s1 + $0x5f0] sm:$0xff]
    %v233 = vld [vmem:[%s1 + $0x5f8] sm:$0xff]
    %v234 = vld [vmem:[%s1 + $0x600] sm:$0xff]
    %v235 = vld [vmem:[%s1 + $0x608] sm:$0xff]
    %v236 = vld [vmem:[%s1 + $0x610] sm:$0xff]
    %v237 = vld [vmem:[%s1 + $0x618] sm:$0xff]
    %v238 = vld [vmem:[%s1 + $0x620] sm:$0xff]
    %v239 = vld [vmem:[%s1 + $0x628] sm:$0xff]
    %v240 = vld [vmem:[%s1 + $0x630] sm:$0xff]
    %v241 = vld [vmem:[%s1 + $0x638] sm:$0xff]
    %v242 = vld [vmem:[%s1 + $0x640] sm:$0xff]
    %v243 = vld [vmem:[%s1 + $0x648] sm:$0xff]
    %v244 = vld [vmem:[%s1 + $0x650] sm:$0xff]
    %v245 = vld [vmem:[%s1 + $0x658] sm:$0xff]
    %v246 = vld [vmem:[%s1 + $0x660] sm:$0xff]
    %v247 = vld [vmem:[%s1 + $0x668] sm:$0xff]
    %v248 = vld [vmem:[%s1 + $0x670] sm:$0xff]
    %v249 = vld [vmem:[%s1 + $0x678] sm:$0xff]
    %v250 = vld [vmem:[%s1 + $0x680] sm:$0xff]
    %v251 = vld [vmem:[%s1 + $0x688] sm:$0xff]
    %v252 = vld [vmem:[%s1 + $0x690] sm:$0xff]
    %v253 = vld [vmem:[%s1 + $0x698] sm:$0xff]
    %v254 = vld [vmem:[%s1 + $0x6a0] sm:$0xff]
    %v255 = vld [vmem:[%s1 + $0x6a8] sm:$0xff]
    %v256 = vld [vmem:[%s1 + $0x6b0] sm:$0xff]
    %v257 = vld [vmem:[%s1 + $0x6b8] sm:$0xff]
    %v258 = vld [vmem:[%s1 + $0x6c0] sm:$0xff]
    %v259 = vld [vmem:[%s1 + $0x6c8] sm:$0xff]
    %v260 = vld [vmem:[%s1 + $0x6d0] sm:$0xff]
    %v261 = vld [vmem:[%s1 + $0x6d8] sm:$0xff]
    %v262 = vld [vmem:[%s1 + $0x6e0] sm:$0xff]
    %v263 = vld [vmem:[%s1 + $0x6e8] sm:$0xff]
    %v264 = vld [vmem:[%s1 + $0x6f0] sm:$0xff]
    %v265 = vld [vmem:[%s1 + $0x6f8] sm:$0xff]
    %v266 = vld [vmem:[%s1 + $0x700] sm:$0xff]
    %v267 = vld [vmem:[%s1 + $0x708] sm:$0xff]
    %v268 = vld [vmem:[%s1 + $0x710] sm:$0xff]
    %v269 = vld [vmem:[%s1 + $0x718] sm:$0xff]
    %v270 = vld [vmem:[%s1 + $0x720] sm:$0xff]
    %v271 = vld [vmem:[%s1 + $0x728] sm:$0xff]
    %v272 = vld [vmem:[%s1 + $0x730] sm:$0xff]
    %v273 = vld [vmem:[%s1 + $0x738] sm:$0xff]
    %v274 = vld [vmem:[%s1 + $0x740] sm:$0xff]
    %v275 = vld [vmem:[%s1 + $0x748] sm:$0xff]
    %v276 = vld [vmem:[%s1 + $0x750] sm:$0xff]
    %v277 = vld [vmem:[%s1 + $0x758] sm:$0xff]
    %v278 = vld [vmem:[%s1 + $0x760] sm:$0xff]
    %v279 = vld [vmem:[%s1 + $0x768] sm:$0xff]
    %v280 = vld [vmem:[%s1 + $0x770] sm:$0xff]
    %v281 = vld [vmem:[%s1 + $0x778] sm:$0xff]
    %v282 = vld [vmem:[%s1 + $0x780] sm:$0xff]
    %v283 = vld [vmem:[%s1 + $0x788] sm:$0xff]
    %v284 = vld [vmem:[%s1 + $0x790] sm:$0xff]
    %v285 = vld [vmem:[%s1 + $0x798] sm:$0xff]
    %v286 = vld [vmem:[%s1 + $0x7a0] sm:$0xff]
    %v287 = vld [vmem:[%s1 + $0x7a8] sm:$0xff]
    %v288 = vld [vmem:[%s1 + $0x7b0] sm:$0xff]
    %v289 = vld [vmem:[%s1 + $0x7b8] sm:$0xff]
    %v290 = vld [vmem:[%s1 + $0x7c0] sm:$0xff]
    %v291 = vld [vmem:[%s1 + $0x7c8] sm:$0xff]
    %v292 = vld [vmem:[%s1 + $0x7d0] sm:$0xff]
    %v293 = vld [vmem:[%s1 + $0x7d8] sm:$0xff]
    %v294 = vld [vmem:[%s1 + $0x7e0] sm:$0xff]
    %v295 = vld [vmem:[%s1 + $0x7e8] sm:$0xff]
    %v296 = vld [vmem:[%s1 + $0x7f0] sm:$0xff]
    %v297 = vld [vmem:[%s1 + $0x7f8] sm:$0xff]
    %v298 = vld [vmem:[%s1 + $0x800] sm:$0xff]
    %v299 = vld [vmem:[%s1 + $0x808] sm:$0xff]
    %v300 = vld [vmem:[%s1 + $0x810] sm:$0xff]
    %v301 = vld [vmem:[%s1 + $0x818] sm:$0xff]
    %v302 = vld [vmem:[%s1 + $0x820] sm:$0xff]
    %v303 = vld [vmem:[%s1 + $0x828] sm:$0xff]
    %v304 = vld [vmem:[%s1 + $0x830] sm:$0xff]
    %v305 = vld [vmem:[%s1 + $0x838] sm:$0xff]
    %v306 = vld [vmem:[%s1 + $0x840] sm:$0xff]
    %v307 = vld [vmem:[%s1 + $0x848] sm:$0xff]
    %v308 = vld [vmem:[%s1 + $0x850] sm:$0xff]
    %v309 = vld [vmem:[%s1 + $0x858] sm:$0xff]
    %v310 = vld [vmem:[%s1 + $0x860] sm:$0xff]
    %v311 = vld [vmem:[%s1 + $0x868] sm:$0xff]
    %v312 = vld [vmem:[%s1 + $0x870] sm:$0xff]
    %v313 = vld [vmem:[%s1 + $0x878] sm:$0xff]
    %v314 = vld [vmem:[%s1 + $0x880] sm:$0xff]
    %v315 = vld [vmem:[%s1 + $0x888] sm:$0xff]
    %v316 = vld [vmem:[%s1 + $0x890] sm:$0xff]
    %v317 = vld [vmem:[%s1 + $0x898] sm:$0xff]
    %v318 = vld [vmem:[%s1 + $0x8a0] sm:$0xff]
    %v319 = vld [vmem:[%s1 + $0x8a8] sm:$0xff]
    %v320 = vld [vmem:[%s1 + $0x8b0] sm:$0xff]
    %v321 = vld [vmem:[%s1 + $0x8b8] sm:$0xff]
    %v322 = vld [vmem:[%s1 + $0x8c0] sm:$0xff]
    %v323 = vld [vmem:[%s1 + $0x8c8] sm:$0xff]
    %v324 = vld [vmem:[%s1 + $0x8d0] sm:$0xff]
    %v325 = vld [vmem:[%s1 + $0x8d8] sm:$0xff]
    %v326 = vld [vmem:[%s1 + $0x8e0] sm:$0xff]
    %v327 = vld [vmem:[%s1 + $0x8e8] sm:$0xff]
    %v328 = vld [vmem:[%s1 + $0x8f0] sm:$0xff]
    %v329 = vld [vmem:[%s1 + $0x8f8] sm:$0xff]
    %v330 = vld [vmem:[%s1 + $0x900] sm:$0xff]
    %v331 = vld [vmem:[%s1 + $0x908] sm:$0xff]
    %v332 = vld [vmem:[%s1 + $0x910] sm:$0xff]
    %v333 = vld [vmem:[%s1 + $0x918] sm:$0xff]
    %v334 = vld [vmem:[%s1 + $0x920] sm:$0xff]
    %v335 = vld [vmem:[%s1 + $0x928] sm:$0xff]
    %v336 = vld [vmem:[%s1 + $0x930] sm:$0xff]
    %v337 = vld [vmem:[%s1 + $0x938] sm:$0xff]
    %v338 = vld [vmem:[%s1 + $0x940] sm:$0xff]
    %v339 = vld [vmem:[%s1 + $0x948] sm:$0xff]
    %v340 = vld [vmem:[%s1 + $0x950] sm:$0xff]
    %v341 = vld [vmem:[%s1 + $0x958] sm:$0xff]
    %v342 = vld [vmem:[%s1 + $0x960] sm:$0xff]
    %v343 = vld [vmem:[%s1 + $0x968] sm:$0xff]
    %v344 = vld [vmem:[%s1 + $0x970] sm:$0xff]
    %v345 = vld [vmem:[%s1 + $0x978] sm:$0xff]
    %v346 = vld [vmem:[%s1 + $0x980] sm:$0xff]
    %v347 = vld [vmem:[%s1 + $0x988] sm:$0xff]
    %v348 = vld [vmem:[%s1 + $0x990] sm:$0xff]
    %v349 = vld [vmem:[%s1 + $0x998] sm:$0xff]
    %v350 = vld [vmem:[%s1 + $0x9a0] sm:$0xff]
    %v351 = vld [vmem:[%s1 + $0x9a8] sm:$0xff]
    %v352 = vld [vmem:[%s1 + $0x9b0] sm:$0xff]
    %v353 = vld [vmem:[%s1 + $0x9b8] sm:$0xff]
    %v354 = vld [vmem:[%s1 + $0x9c0] sm:$0xff]
    %v355 = vld [vmem:[%s1 + $0x9c8] sm:$0xff]
    %v356 = vld [vmem:[%s1 + $0x9d0] sm:$0xff]
    %v357 = vld [vmem:[%s1 + $0x9d8] sm:$0xff]
    %v358 = vld [vmem:[%s1 + $0x9e0] sm:$0xff]
    %v359 = vld [vmem:[%s1 + $0x9e8] sm:$0xff]
    %v360 = vld [vmem:[%s1 + $0x9f0] sm:$0xff]
    %v361 = vld [vmem:[%s1 + $0x9f8] sm:$0xff]
    %v362 = vld [vmem:[%s1 + $0xa00] sm:$0xff]
    %v363 = vld [vmem:[%s1 + $0xa08] sm:$0xff]
    %v364 = vld [vmem:[%s1 + $0xa10] sm:$0xff]
    %v365 = vld [vmem:[%s1 + $0xa18] sm:$0xff]
    %v366 = vld [vmem:[%s1 + $0xa20] sm:$0xff]
    %v367 = vld [vmem:[%s1 + $0xa28] sm:$0xff]
    %v368 = vld [vmem:[%s1 + $0xa30] sm:$0xff]
    %v369 = vld [vmem:[%s1 + $0xa38] sm:$0xff]
    %v370 = vld [vmem:[%s1 + $0xa40] sm:$0xff]
    %v371 = vld [vmem:[%s1 + $0xa48] sm:$0xff]
    %v372 = vld [vmem:[%s1 + $0xa50] sm:$0xff]
    %v373 = vld [vmem:[%s1 + $0xa58] sm:$0xff]
    %v374 = vld [vmem:[%s1 + $0xa60] sm:$0xff]
    %v375 = vld [vmem:[%s1 + $0xa68] sm:$0xff]
    %v376 = vld [vmem:[%s1 + $0xa70] sm:$0xff]
    %v377 = vld [vmem:[%s1 + $0xa78] sm:$0xff]
    %v378 = vld [vmem:[%s1 + $0xa80] sm:$0xff]
    %v379 = vld [vmem:[%s1 + $0xa88] sm:$0xff]
    %v380 = vld [vmem:[%s1 + $0xa90] sm:$0xff]
    %v381 = vld [vmem:[%s1 + $0xa98] sm:$0xff]
    %v382 = vld [vmem:[%s1 + $0xaa0] sm:$0xff]
    %v383 = vld [vmem:[%s1 + $0xaa8] sm:$0xff]
    %v384 = vld [vmem:[%s1 + $0xab0] sm:$0xff]
    %v385 = vld [vmem:[%s1 + $0xab8] sm:$0xff]
    %v386 = vld [vmem:[%s1 + $0xac0] sm:$0xff]
    %v387 = vld [vmem:[%s1 + $0xac8] sm:$0xff]
    %v388 = vld [vmem:[%s1 + $0xad0] sm:$0xff]
    %v389 = vld [vmem:[%s1 + $0xad8] sm:$0xff]
    %v390 = vld [vmem:[%s1 + $0xae0] sm:$0xff]
    %v391 = vld [vmem:[%s1 + $0xae8] sm:$0xff]
    %v392 = vld [vmem:[%s1 + $0xaf0] sm:$0xff]
    %v393 = vld [vmem:[%s1 + $0xaf8] sm:$0xff]
    %v394 = vld [vmem:[%s1 + $0xb00] sm:$0xff]
    %v395 = vld [vmem:[%s1 + $0xb08] sm:$0xff]
    %v396 = vld [vmem:[%s1 + $0xb10] sm:$0xff]
    %v397 = vld [vmem:[%s1 + $0xb18] sm:$0xff]
    %v398 = vld [vmem:[%s1 + $0xb20] sm:$0xff]
    %v399 = vld [vmem:[%s1 + $0xb28] sm:$0xff]
    %v400 = vld [vmem:[%s1 + $0xb30] sm:$0xff]
    %v401 = vld [vmem:[%s1 + $0xb38] sm:$0xff]
    %v402 = vld [vmem:[%s1 + $0xb40] sm:$0xff]
    %v403 = vld [vmem:[%s1 + $0xb48] sm:$0xff]
    %v404 = vld [vmem:[%s1 + $0xb50] sm:$0xff]
    %v405 = vld [vmem:[%s1 + $0xb58] sm:$0xff]
    %v406 = vld [vmem:[%s1 + $0xb60] sm:$0xff]
    %v407 = vld [vmem:[%s1 + $0xb68] sm:$0xff]
    %v408 = vld [vmem:[%s1 + $0xb70] sm:$0xff]
    %v409 = vld [vmem:[%s1 + $0xb78] sm:$0xff]
    %v410 = vld [vmem:[%s1 + $0xb80] sm:$0xff]
    %v411 = vld [vmem:[%s1 + $0xb88] sm:$0xff]
    %v412 = vld [vmem:[%s1 + $0xb90] sm:$0xff]
    %v413 = vld [vmem:[%s1 + $0xb98] sm:$0xff]
    %v414 = vld [vmem:[%s1 + $0xba0] sm:$0xff]
    %v415 = vld [vmem:[%s1 + $0xba8] sm:$0xff]
    %v416 = vld [vmem:[%s1 + $0xbb0] sm:$0xff]
    %v417 = vld [vmem:[%s1 + $0xbb8] sm:$0xff]
    %v418 = vld [vmem:[%s1 + $0xbc0] sm:$0xff]
    %v419 = vld [vmem:[%s1 + $0xbc8] sm:$0xff]
    %v420 = vld [vmem:[%s1 + $0xbd0] sm:$0xff]
    %v421 = vld [vmem:[%s1 + $0xbd8] sm:$0xff]
    %v422 = vld [vmem:[%s1 + $0xbe0] sm:$0xff]
    %v423 = vld [vmem:[%s1 + $0xbe8] sm:$0xff]
    %v424 = vld [vmem:[%s1 + $0xbf0] sm:$0xff]
    %v425 = vld [vmem:[%s1 + $0xbf8] sm:$0xff]
    %v426 = vld [vmem:[%s2] sm:$0xff]
    %v427 = vmul.f32 %v18, %v18
    %v428 = vmul.f32 %v19, %v19
    %v429 = vmul.f32 %v20, %v20
    %v430 = vmul.f32 %v21, %v21
    %v431 = vmul.f32 %v22, %v22
    %v432 = vmul.f32 %v23, %v23
    %v433 = vmul.f32 %v24, %v24
    %v434 = vmul.f32 %v25, %v25
    %v435 = vmul.f32 %v26, %v26
    %v436 = vmul.f32 %v27, %v27
    %v437 = vmul.f32 %v28, %v28
    %v438 = vmul.f32 %v29, %v29
    %v439 = vmul.f32 %v30, %v30
    %v440 = vmul.f32 %v31, %v31
    %v441 = vmul.f32 %v32, %v32
    %v442 = vmul.f32 %v33, %v33
    %v443 = vmul.f32 %v34, %v34
    %v444 = vmul.f32 %v35, %v35
    %v445 = vmul.f32 %v36, %v36
    %v446 = vmul.f32 %v37, %v37
    %v447 = vmul.f32 %v38, %v38
    %v448 = vmul.f32 %v39, %v39
    %v449 = vmul.f32 %v40, %v40
    %v450 = vmul.f32 %v41, %v41
    %v451 = vadd.f32 %v427, %v428
    %v452 = vadd.f32 %v451, %v429
    %v453 = vadd.f32 %v452, %v430
    %v454 = vadd.f32 %v453, %v431
    %v455 = vadd.f32 %v454, %v432
    %v456 = vadd.f32 %v455, %v433
    %v457 = vadd.f32 %v456, %v434
    %v458 = vadd.f32 %v457, %v435
    %v459 = vadd.f32 %v458, %v436
    %v460 = vadd.f32 %v459, %v437
    %v461 = vadd.f32 %v460, %v438
    %v462 = vadd.f32 %v461, %v439
    %v463 = vadd.f32 %v462, %v440
    %v464 = vadd.f32 %v463, %v441
    %v465 = vadd.f32 %v464, %v442
    %v466 = vadd.f32 %v465, %v443
    %v467 = vadd.f32 %v466, %v444
    %v468 = vadd.f32 %v467, %v445
    %v469 = vadd.f32 %v468, %v446
    %v470 = vadd.f32 %v469, %v447
    %v471 = vadd.f32 %v470, %v448
    %v472 = vadd.f32 %v471, %v449
    %v473 = vadd.f32 %v472, %v450
    %474 = vadd.xlane.f32.xlu0 %v473
    %v475 = vpop.xlane.xlu0 %474
    %v476 = vmax.f32 %v475, 1e-24
    %v477 = vrsqrt.pop %v476
    %v478 = vmul.f32 %v18, %v477
    %v479 = vmul.f32 %v19, %v477
    %v480 = vmul.f32 %v20, %v477
    %v481 = vmul.f32 %v21, %v477
    %v482 = vmul.f32 %v22, %v477
    %v483 = vmul.f32 %v23, %v477
    %v484 = vmul.f32 %v24, %v477
    %v485 = vmul.f32 %v25, %v477
    %v486 = vmul.f32 %v26, %v477
    %v487 = vmul.f32 %v27, %v477
    %v488 = vmul.f32 %v28, %v477
    %v489 = vmul.f32 %v29, %v477
    %v490 = vmul.f32 %v30, %v477
    %v491 = vmul.f32 %v31, %v477
    %v492 = vmul.f32 %v32, %v477
    %v493 = vmul.f32 %v33, %v477
    %v494 = vmul.f32 %v34, %v477
    %v495 = vmul.f32 %v35, %v477
    %v496 = vmul.f32 %v36, %v477
    %v497 = vmul.f32 %v37, %v477
    %v498 = vmul.f32 %v38, %v477
    %v499 = vmul.f32 %v39, %v477
    %v500 = vmul.f32 %v40, %v477
    %v501 = vmul.f32 %v41, %v477
    %v502 = vmul.f32 %v42, %v42
    %v503 = vmul.f32 %v43, %v43
    %v504 = vmul.f32 %v44, %v44
    %v505 = vmul.f32 %v45, %v45
    %v506 = vmul.f32 %v46, %v46
    %v507 = vmul.f32 %v47, %v47
    %v508 = vmul.f32 %v48, %v48
    %v509 = vmul.f32 %v49, %v49
    %v510 = vmul.f32 %v50, %v50
    %v511 = vmul.f32 %v51, %v51
    %v512 = vmul.f32 %v52, %v52
    %v513 = vmul.f32 %v53, %v53
    %v514 = vmul.f32 %v54, %v54
    %v515 = vmul.f32 %v55, %v55
    %v516 = vmul.f32 %v56, %v56
    %v517 = vmul.f32 %v57, %v57
    %v518 = vmul.f32 %v58, %v58
    %v519 = vmul.f32 %v59, %v59
    %v520 = vmul.f32 %v60, %v60
    %v521 = vmul.f32 %v61, %v61
    %v522 = vmul.f32 %v62, %v62
    %v523 = vmul.f32 %v63, %v63
    %v524 = vmul.f32 %v64, %v64
    %v525 = vmul.f32 %v65, %v65
    %v526 = vmul.f32 %v66, %v66
    %v527 = vmul.f32 %v67, %v67
    %v528 = vmul.f32 %v68, %v68
    %v529 = vmul.f32 %v69, %v69
    %v530 = vmul.f32 %v70, %v70
    %v531 = vmul.f32 %v71, %v71
    %v532 = vmul.f32 %v72, %v72
    %v533 = vmul.f32 %v73, %v73
    %v534 = vmul.f32 %v74, %v74
    %v535 = vmul.f32 %v75, %v75
    %v536 = vmul.f32 %v76, %v76
    %v537 = vmul.f32 %v77, %v77
    %v538 = vmul.f32 %v78, %v78
    %v539 = vmul.f32 %v79, %v79
    %v540 = vmul.f32 %v80, %v80
    %v541 = vmul.f32 %v81, %v81
    %v542 = vmul.f32 %v82, %v82
    %v543 = vmul.f32 %v83, %v83
    %v544 = vmul.f32 %v84, %v84
    %v545 = vmul.f32 %v85, %v85
    %v546 = vmul.f32 %v86, %v86
    %v547 = vmul.f32 %v87, %v87
    %v548 = vmul.f32 %v88, %v88
    %v549 = vmul.f32 %v89, %v89
    %v550 = vmul.f32 %v90, %v90
    %v551 = vmul.f32 %v91, %v91
    %v552 = vmul.f32 %v92, %v92
    %v553 = vmul.f32 %v93, %v93
    %v554 = vmul.f32 %v94, %v94
    %v555 = vmul.f32 %v95, %v95
    %v556 = vmul.f32 %v96, %v96
    %v557 = vmul.f32 %v97, %v97
    %v558 = vmul.f32 %v98, %v98
    %v559 = vmul.f32 %v99, %v99
    %v560 = vmul.f32 %v100, %v100
    %v561 = vmul.f32 %v101, %v101
    %v562 = vmul.f32 %v102, %v102
    %v563 = vmul.f32 %v103, %v103
    %v564 = vmul.f32 %v104, %v104
    %v565 = vmul.f32 %v105, %v105
    %v566 = vmul.f32 %v106, %v106
    %v567 = vmul.f32 %v107, %v107
    %v568 = vmul.f32 %v108, %v108
    %v569 = vmul.f32 %v109, %v109
    %v570 = vmul.f32 %v110, %v110
    %v571 = vmul.f32 %v111, %v111
    %v572 = vmul.f32 %v112, %v112
    %v573 = vmul.f32 %v113, %v113
    %v574 = vmul.f32 %v114, %v114
    %v575 = vmul.f32 %v115, %v115
    %v576 = vmul.f32 %v116, %v116
    %v577 = vmul.f32 %v117, %v117
    %v578 = vmul.f32 %v118, %v118
    %v579 = vmul.f32 %v119, %v119
    %v580 = vmul.f32 %v120, %v120
    %v581 = vmul.f32 %v121, %v121
    %v582 = vmul.f32 %v122, %v122
    %v583 = vmul.f32 %v123, %v123
    %v584 = vmul.f32 %v124, %v124
    %v585 = vmul.f32 %v125, %v125
    %v586 = vmul.f32 %v126, %v126
    %v587 = vmul.f32 %v127, %v127
    %v588 = vmul.f32 %v128, %v128
    %v589 = vmul.f32 %v129, %v129
    %v590 = vmul.f32 %v130, %v130
    %v591 = vmul.f32 %v131, %v131
    %v592 = vmul.f32 %v132, %v132
    %v593 = vmul.f32 %v133, %v133
    %v594 = vmul.f32 %v134, %v134
    %v595 = vmul.f32 %v135, %v135
    %v596 = vmul.f32 %v136, %v136
    %v597 = vmul.f32 %v137, %v137
    %v598 = vmul.f32 %v138, %v138
    %v599 = vmul.f32 %v139, %v139
    %v600 = vmul.f32 %v140, %v140
    %v601 = vmul.f32 %v141, %v141
    %v602 = vmul.f32 %v142, %v142
    %v603 = vmul.f32 %v143, %v143
    %v604 = vmul.f32 %v144, %v144
    %v605 = vmul.f32 %v145, %v145
    %v606 = vmul.f32 %v146, %v146
    %v607 = vmul.f32 %v147, %v147
    %v608 = vmul.f32 %v148, %v148
    %v609 = vmul.f32 %v149, %v149
    %v610 = vmul.f32 %v150, %v150
    %v611 = vmul.f32 %v151, %v151
    %v612 = vmul.f32 %v152, %v152
    %v613 = vmul.f32 %v153, %v153
    %v614 = vmul.f32 %v154, %v154
    %v615 = vmul.f32 %v155, %v155
    %v616 = vmul.f32 %v156, %v156
    %v617 = vmul.f32 %v157, %v157
    %v618 = vmul.f32 %v158, %v158
    %v619 = vmul.f32 %v159, %v159
    %v620 = vmul.f32 %v160, %v160
    %v621 = vmul.f32 %v161, %v161
    %v622 = vmul.f32 %v162, %v162
    %v623 = vmul.f32 %v163, %v163
    %v624 = vmul.f32 %v164, %v164
    %v625 = vmul.f32 %v165, %v165
    %v626 = vmul.f32 %v166, %v166
    %v627 = vmul.f32 %v167, %v167
    %v628 = vmul.f32 %v168, %v168
    %v629 = vmul.f32 %v169, %v169
    %v630 = vmul.f32 %v170, %v170
    %v631 = vmul.f32 %v171, %v171
    %v632 = vmul.f32 %v172, %v172
    %v633 = vmul.f32 %v173, %v173
    %v634 = vmul.f32 %v174, %v174
    %v635 = vmul.f32 %v175, %v175
    %v636 = vmul.f32 %v176, %v176
    %v637 = vmul.f32 %v177, %v177
    %v638 = vmul.f32 %v178, %v178
    %v639 = vmul.f32 %v179, %v179
    %v640 = vmul.f32 %v180, %v180
    %v641 = vmul.f32 %v181, %v181
    %v642 = vmul.f32 %v182, %v182
    %v643 = vmul.f32 %v183, %v183
    %v644 = vmul.f32 %v184, %v184
    %v645 = vmul.f32 %v185, %v185
    %v646 = vmul.f32 %v186, %v186
    %v647 = vmul.f32 %v187, %v187
    %v648 = vmul.f32 %v188, %v188
    %v649 = vmul.f32 %v189, %v189
    %v650 = vmul.f32 %v190, %v190
    %v651 = vmul.f32 %v191, %v191
    %v652 = vmul.f32 %v192, %v192
    %v653 = vmul.f32 %v193, %v193
    %v654 = vmul.f32 %v194, %v194
    %v655 = vmul.f32 %v195, %v195
    %v656 = vmul.f32 %v196, %v196
    %v657 = vmul.f32 %v197, %v197
    %v658 = vmul.f32 %v198, %v198
    %v659 = vmul.f32 %v199, %v199
    %v660 = vmul.f32 %v200, %v200
    %v661 = vmul.f32 %v201, %v201
    %v662 = vmul.f32 %v202, %v202
    %v663 = vmul.f32 %v203, %v203
    %v664 = vmul.f32 %v204, %v204
    %v665 = vmul.f32 %v205, %v205
    %v666 = vmul.f32 %v206, %v206
    %v667 = vmul.f32 %v207, %v207
    %v668 = vmul.f32 %v208, %v208
    %v669 = vmul.f32 %v209, %v209
    %v670 = vmul.f32 %v210, %v210
    %v671 = vmul.f32 %v211, %v211
    %v672 = vmul.f32 %v212, %v212
    %v673 = vmul.f32 %v213, %v213
    %v674 = vmul.f32 %v214, %v214
    %v675 = vmul.f32 %v215, %v215
    %v676 = vmul.f32 %v216, %v216
    %v677 = vmul.f32 %v217, %v217
    %v678 = vmul.f32 %v218, %v218
    %v679 = vmul.f32 %v219, %v219
    %v680 = vmul.f32 %v220, %v220
    %v681 = vmul.f32 %v221, %v221
    %v682 = vmul.f32 %v222, %v222
    %v683 = vmul.f32 %v223, %v223
    %v684 = vmul.f32 %v224, %v224
    %v685 = vmul.f32 %v225, %v225
    %v686 = vmul.f32 %v226, %v226
    %v687 = vmul.f32 %v227, %v227
    %v688 = vmul.f32 %v228, %v228
    %v689 = vmul.f32 %v229, %v229
    %v690 = vmul.f32 %v230, %v230
    %v691 = vmul.f32 %v231, %v231
    %v692 = vmul.f32 %v232, %v232
    %v693 = vmul.f32 %v233, %v233
    %v694 = vmul.f32 %v234, %v234
    %v695 = vmul.f32 %v235, %v235
    %v696 = vmul.f32 %v236, %v236
    %v697 = vmul.f32 %v237, %v237
    %v698 = vmul.f32 %v238, %v238
    %v699 = vmul.f32 %v239, %v239
    %v700 = vmul.f32 %v240, %v240
    %v701 = vmul.f32 %v241, %v241
    %v702 = vmul.f32 %v242, %v242
    %v703 = vmul.f32 %v243, %v243
    %v704 = vmul.f32 %v244, %v244
    %v705 = vmul.f32 %v245, %v245
    %v706 = vmul.f32 %v246, %v246
    %v707 = vmul.f32 %v247, %v247
    %v708 = vmul.f32 %v248, %v248
    %v709 = vmul.f32 %v249, %v249
    %v710 = vmul.f32 %v250, %v250
    %v711 = vmul.f32 %v251, %v251
    %v712 = vmul.f32 %v252, %v252
    %v713 = vmul.f32 %v253, %v253
    %v714 = vmul.f32 %v254, %v254
    %v715 = vmul.f32 %v255, %v255
    %v716 = vmul.f32 %v256, %v256
    %v717 = vmul.f32 %v257, %v257
    %v718 = vmul.f32 %v258, %v258
    %v719 = vmul.f32 %v259, %v259
    %v720 = vmul.f32 %v260, %v260
    %v721 = vmul.f32 %v261, %v261
    %v722 = vmul.f32 %v262, %v262
    %v723 = vmul.f32 %v263, %v263
    %v724 = vmul.f32 %v264, %v264
    %v725 = vmul.f32 %v265, %v265
    %v726 = vmul.f32 %v266, %v266
    %v727 = vmul.f32 %v267, %v267
    %v728 = vmul.f32 %v268, %v268
    %v729 = vmul.f32 %v269, %v269
    %v730 = vmul.f32 %v270, %v270
    %v731 = vmul.f32 %v271, %v271
    %v732 = vmul.f32 %v272, %v272
    %v733 = vmul.f32 %v273, %v273
    %v734 = vmul.f32 %v274, %v274
    %v735 = vmul.f32 %v275, %v275
    %v736 = vmul.f32 %v276, %v276
    %v737 = vmul.f32 %v277, %v277
    %v738 = vmul.f32 %v278, %v278
    %v739 = vmul.f32 %v279, %v279
    %v740 = vmul.f32 %v280, %v280
    %v741 = vmul.f32 %v281, %v281
    %v742 = vmul.f32 %v282, %v282
    %v743 = vmul.f32 %v283, %v283
    %v744 = vmul.f32 %v284, %v284
    %v745 = vmul.f32 %v285, %v285
    %v746 = vmul.f32 %v286, %v286
    %v747 = vmul.f32 %v287, %v287
    %v748 = vmul.f32 %v288, %v288
    %v749 = vmul.f32 %v289, %v289
    %v750 = vmul.f32 %v290, %v290
    %v751 = vmul.f32 %v291, %v291
    %v752 = vmul.f32 %v292, %v292
    %v753 = vmul.f32 %v293, %v293
    %v754 = vmul.f32 %v294, %v294
    %v755 = vmul.f32 %v295, %v295
    %v756 = vmul.f32 %v296, %v296
    %v757 = vmul.f32 %v297, %v297
    %v758 = vmul.f32 %v298, %v298
    %v759 = vmul.f32 %v299, %v299
    %v760 = vmul.f32 %v300, %v300
    %v761 = vmul.f32 %v301, %v301
    %v762 = vmul.f32 %v302, %v302
    %v763 = vmul.f32 %v303, %v303
    %v764 = vmul.f32 %v304, %v304
    %v765 = vmul.f32 %v305, %v305
    %v766 = vmul.f32 %v306, %v306
    %v767 = vmul.f32 %v307, %v307
    %v768 = vmul.f32 %v308, %v308
    %v769 = vmul.f32 %v309, %v309
    %v770 = vmul.f32 %v310, %v310
    %v771 = vmul.f32 %v311, %v311
    %v772 = vmul.f32 %v312, %v312
    %v773 = vmul.f32 %v313, %v313
    %v774 = vmul.f32 %v314, %v314
    %v775 = vmul.f32 %v315, %v315
    %v776 = vmul.f32 %v316, %v316
    %v777 = vmul.f32 %v317, %v317
    %v778 = vmul.f32 %v318, %v318
    %v779 = vmul.f32 %v319, %v319
    %v780 = vmul.f32 %v320, %v320
    %v781 = vmul.f32 %v321, %v321
    %v782 = vmul.f32 %v322, %v322
    %v783 = vmul.f32 %v323, %v323
    %v784 = vmul.f32 %v324, %v324
    %v785 = vmul.f32 %v325, %v325
    %v786 = vmul.f32 %v326, %v326
    %v787 = vmul.f32 %v327, %v327
    %v788 = vmul.f32 %v328, %v328
    %v789 = vmul.f32 %v329, %v329
    %v790 = vmul.f32 %v330, %v330
    %v791 = vmul.f32 %v331, %v331
    %v792 = vmul.f32 %v332, %v332
    %v793 = vmul.f32 %v333, %v333
    %v794 = vmul.f32 %v334, %v334
    %v795 = vmul.f32 %v335, %v335
    %v796 = vmul.f32 %v336, %v336
    %v797 = vmul.f32 %v337, %v337
    %v798 = vmul.f32 %v338, %v338
    %v799 = vmul.f32 %v339, %v339
    %v800 = vmul.f32 %v340, %v340
    %v801 = vmul.f32 %v341, %v341
    %v802 = vmul.f32 %v342, %v342
    %v803 = vmul.f32 %v343, %v343
    %v804 = vmul.f32 %v344, %v344
    %v805 = vmul.f32 %v345, %v345
    %v806 = vmul.f32 %v346, %v346
    %v807 = vmul.f32 %v347, %v347
    %v808 = vmul.f32 %v348, %v348
    %v809 = vmul.f32 %v349, %v349
    %v810 = vmul.f32 %v350, %v350
    %v811 = vmul.f32 %v351, %v351
    %v812 = vmul.f32 %v352, %v352
    %v813 = vmul.f32 %v353, %v353
    %v814 = vmul.f32 %v354, %v354
    %v815 = vmul.f32 %v355, %v355
    %v816 = vmul.f32 %v356, %v356
    %v817 = vmul.f32 %v357, %v357
    %v818 = vmul.f32 %v358, %v358
    %v819 = vmul.f32 %v359, %v359
    %v820 = vmul.f32 %v360, %v360
    %v821 = vmul.f32 %v361, %v361
    %v822 = vmul.f32 %v362, %v362
    %v823 = vmul.f32 %v363, %v363
    %v824 = vmul.f32 %v364, %v364
    %v825 = vmul.f32 %v365, %v365
    %v826 = vmul.f32 %v366, %v366
    %v827 = vmul.f32 %v367, %v367
    %v828 = vmul.f32 %v368, %v368
    %v829 = vmul.f32 %v369, %v369
    %v830 = vmul.f32 %v370, %v370
    %v831 = vmul.f32 %v371, %v371
    %v832 = vmul.f32 %v372, %v372
    %v833 = vmul.f32 %v373, %v373
    %v834 = vmul.f32 %v374, %v374
    %v835 = vmul.f32 %v375, %v375
    %v836 = vmul.f32 %v376, %v376
    %v837 = vmul.f32 %v377, %v377
    %v838 = vmul.f32 %v378, %v378
    %v839 = vmul.f32 %v379, %v379
    %v840 = vmul.f32 %v380, %v380
    %v841 = vmul.f32 %v381, %v381
    %v842 = vmul.f32 %v382, %v382
    %v843 = vmul.f32 %v383, %v383
    %v844 = vmul.f32 %v384, %v384
    %v845 = vmul.f32 %v385, %v385
    %v846 = vmul.f32 %v386, %v386
    %v847 = vmul.f32 %v387, %v387
    %v848 = vmul.f32 %v388, %v388
    %v849 = vmul.f32 %v389, %v389
    %v850 = vmul.f32 %v390, %v390
    %v851 = vmul.f32 %v391, %v391
    %v852 = vmul.f32 %v392, %v392
    %v853 = vmul.f32 %v393, %v393
    %v854 = vmul.f32 %v394, %v394
    %v855 = vmul.f32 %v395, %v395
    %v856 = vmul.f32 %v396, %v396
    %v857 = vmul.f32 %v397, %v397
    %v858 = vmul.f32 %v398, %v398
    %v859 = vmul.f32 %v399, %v399
    %v860 = vmul.f32 %v400, %v400
    %v861 = vmul.f32 %v401, %v401
    %v862 = vmul.f32 %v402, %v402
    %v863 = vmul.f32 %v403, %v403
    %v864 = vmul.f32 %v404, %v404
    %v865 = vmul.f32 %v405, %v405
    %v866 = vmul.f32 %v406, %v406
    %v867 = vmul.f32 %v407, %v407
    %v868 = vmul.f32 %v408, %v408
    %v869 = vmul.f32 %v409, %v409
    %v870 = vmul.f32 %v410, %v410
    %v871 = vmul.f32 %v411, %v411
    %v872 = vmul.f32 %v412, %v412
    %v873 = vmul.f32 %v413, %v413
    %v874 = vmul.f32 %v414, %v414
    %v875 = vmul.f32 %v415, %v415
    %v876 = vmul.f32 %v416, %v416
    %v877 = vmul.f32 %v417, %v417
    %v878 = vmul.f32 %v418, %v418
    %v879 = vmul.f32 %v419, %v419
    %v880 = vmul.f32 %v420, %v420
    %v881 = vmul.f32 %v421, %v421
    %v882 = vmul.f32 %v422, %v422
    %v883 = vmul.f32 %v423, %v423
    %v884 = vmul.f32 %v424, %v424
    %v885 = vmul.f32 %v425, %v425
    %vm886 = vcmask 130048
    %v887 = vsel %vm886, %v502, 0.0
    %v888 = vsel %vm886, %v503, 0.0
    %v889 = vadd.f32 %v887, %v888
    %v890 = vsel %vm886, %v504, 0.0
    %v891 = vadd.f32 %v889, %v890
    %v892 = vsel %vm886, %v505, 0.0
    %v893 = vadd.f32 %v891, %v892
    %v894 = vsel %vm886, %v506, 0.0
    %v895 = vadd.f32 %v893, %v894
    %v896 = vsel %vm886, %v507, 0.0
    %v897 = vadd.f32 %v895, %v896
    %v898 = vsel %vm886, %v508, 0.0
    %v899 = vadd.f32 %v897, %v898
    %v900 = vsel %vm886, %v509, 0.0
    %v901 = vadd.f32 %v899, %v900
    %v902 = vsel %vm886, %v510, 0.0
    %v903 = vadd.f32 %v901, %v902
    %v904 = vsel %vm886, %v511, 0.0
    %v905 = vadd.f32 %v903, %v904
    %v906 = vsel %vm886, %v512, 0.0
    %v907 = vadd.f32 %v905, %v906
    %v908 = vsel %vm886, %v513, 0.0
    %v909 = vadd.f32 %v907, %v908
    %v910 = vsel %vm886, %v514, 0.0
    %v911 = vadd.f32 %v909, %v910
    %v912 = vsel %vm886, %v515, 0.0
    %v913 = vadd.f32 %v911, %v912
    %v914 = vsel %vm886, %v516, 0.0
    %v915 = vadd.f32 %v913, %v914
    %v916 = vsel %vm886, %v517, 0.0
    %v917 = vadd.f32 %v915, %v916
    %v918 = vsel %vm886, %v518, 0.0
    %v919 = vadd.f32 %v917, %v918
    %v920 = vsel %vm886, %v519, 0.0
    %v921 = vadd.f32 %v919, %v920
    %v922 = vsel %vm886, %v520, 0.0
    %v923 = vadd.f32 %v921, %v922
    %v924 = vsel %vm886, %v521, 0.0
    %v925 = vadd.f32 %v923, %v924
    %v926 = vsel %vm886, %v522, 0.0
    %v927 = vadd.f32 %v925, %v926
    %v928 = vsel %vm886, %v523, 0.0
    %v929 = vadd.f32 %v927, %v928
    %v930 = vsel %vm886, %v524, 0.0
    %v931 = vadd.f32 %v929, %v930
    %v932 = vsel %vm886, %v525, 0.0
    %v933 = vadd.f32 %v931, %v932
    %v934 = vsel %vm886, %v526, 0.0
    %v935 = vadd.f32 %v933, %v934
    %v936 = vsel %vm886, %v527, 0.0
    %v937 = vadd.f32 %v935, %v936
    %v938 = vsel %vm886, %v528, 0.0
    %v939 = vadd.f32 %v937, %v938
    %v940 = vsel %vm886, %v529, 0.0
    %v941 = vadd.f32 %v939, %v940
    %v942 = vsel %vm886, %v530, 0.0
    %v943 = vadd.f32 %v941, %v942
    %v944 = vsel %vm886, %v531, 0.0
    %v945 = vadd.f32 %v943, %v944
    %v946 = vsel %vm886, %v532, 0.0
    %v947 = vadd.f32 %v945, %v946
    %v948 = vsel %vm886, %v533, 0.0
    %v949 = vadd.f32 %v947, %v948
    %v950 = vsel %vm886, %v534, 0.0
    %v951 = vadd.f32 %v949, %v950
    %v952 = vsel %vm886, %v535, 0.0
    %v953 = vadd.f32 %v951, %v952
    %v954 = vsel %vm886, %v536, 0.0
    %v955 = vadd.f32 %v953, %v954
    %v956 = vsel %vm886, %v537, 0.0
    %v957 = vadd.f32 %v955, %v956
    %v958 = vsel %vm886, %v538, 0.0
    %v959 = vadd.f32 %v957, %v958
    %v960 = vsel %vm886, %v539, 0.0
    %v961 = vadd.f32 %v959, %v960
    %v962 = vsel %vm886, %v540, 0.0
    %v963 = vadd.f32 %v961, %v962
    %v964 = vsel %vm886, %v541, 0.0
    %v965 = vadd.f32 %v963, %v964
    %v966 = vsel %vm886, %v542, 0.0
    %v967 = vadd.f32 %v965, %v966
    %v968 = vsel %vm886, %v543, 0.0
    %v969 = vadd.f32 %v967, %v968
    %v970 = vsel %vm886, %v544, 0.0
    %v971 = vadd.f32 %v969, %v970
    %v972 = vsel %vm886, %v545, 0.0
    %v973 = vadd.f32 %v971, %v972
    %v974 = vsel %vm886, %v546, 0.0
    %v975 = vadd.f32 %v973, %v974
    %v976 = vsel %vm886, %v547, 0.0
    %v977 = vadd.f32 %v975, %v976
    %v978 = vsel %vm886, %v548, 0.0
    %v979 = vadd.f32 %v977, %v978
    %v980 = vsel %vm886, %v549, 0.0
    %v981 = vadd.f32 %v979, %v980
    %v982 = vsel %vm886, %v550, 0.0
    %v983 = vadd.f32 %v981, %v982
    %v984 = vsel %vm886, %v551, 0.0
    %v985 = vadd.f32 %v983, %v984
    %v986 = vsel %vm886, %v552, 0.0
    %v987 = vadd.f32 %v985, %v986
    %v988 = vsel %vm886, %v553, 0.0
    %v989 = vadd.f32 %v987, %v988
    %v990 = vsel %vm886, %v554, 0.0
    %v991 = vadd.f32 %v989, %v990
    %v992 = vsel %vm886, %v555, 0.0
    %v993 = vadd.f32 %v991, %v992
    %v994 = vsel %vm886, %v556, 0.0
    %v995 = vadd.f32 %v993, %v994
    %v996 = vsel %vm886, %v557, 0.0
    %v997 = vadd.f32 %v995, %v996
    %v998 = vsel %vm886, %v558, 0.0
    %v999 = vadd.f32 %v997, %v998
    %v1000 = vsel %vm886, %v559, 0.0
    %v1001 = vadd.f32 %v999, %v1000
    %v1002 = vsel %vm886, %v560, 0.0
    %v1003 = vadd.f32 %v1001, %v1002
    %v1004 = vsel %vm886, %v561, 0.0
    %v1005 = vadd.f32 %v1003, %v1004
    %v1006 = vsel %vm886, %v562, 0.0
    %v1007 = vadd.f32 %v1005, %v1006
    %v1008 = vsel %vm886, %v563, 0.0
    %v1009 = vadd.f32 %v1007, %v1008
    %v1010 = vsel %vm886, %v564, 0.0
    %v1011 = vadd.f32 %v1009, %v1010
    %v1012 = vsel %vm886, %v565, 0.0
    %v1013 = vadd.f32 %v1011, %v1012
    %v1014 = vsel %vm886, %v566, 0.0
    %v1015 = vadd.f32 %v1013, %v1014
    %v1016 = vsel %vm886, %v567, 0.0
    %v1017 = vadd.f32 %v1015, %v1016
    %v1018 = vsel %vm886, %v568, 0.0
    %v1019 = vadd.f32 %v1017, %v1018
    %v1020 = vsel %vm886, %v569, 0.0
    %v1021 = vadd.f32 %v1019, %v1020
    %v1022 = vsel %vm886, %v570, 0.0
    %v1023 = vadd.f32 %v1021, %v1022
    %v1024 = vsel %vm886, %v571, 0.0
    %v1025 = vadd.f32 %v1023, %v1024
    %v1026 = vsel %vm886, %v572, 0.0
    %v1027 = vadd.f32 %v1025, %v1026
    %v1028 = vsel %vm886, %v573, 0.0
    %v1029 = vadd.f32 %v1027, %v1028
    %v1030 = vsel %vm886, %v574, 0.0
    %v1031 = vadd.f32 %v1029, %v1030
    %v1032 = vsel %vm886, %v575, 0.0
    %v1033 = vadd.f32 %v1031, %v1032
    %v1034 = vsel %vm886, %v576, 0.0
    %v1035 = vadd.f32 %v1033, %v1034
    %v1036 = vsel %vm886, %v577, 0.0
    %v1037 = vadd.f32 %v1035, %v1036
    %v1038 = vsel %vm886, %v578, 0.0
    %v1039 = vadd.f32 %v1037, %v1038
    %v1040 = vsel %vm886, %v579, 0.0
    %v1041 = vadd.f32 %v1039, %v1040
    %v1042 = vsel %vm886, %v580, 0.0
    %v1043 = vadd.f32 %v1041, %v1042
    %v1044 = vsel %vm886, %v581, 0.0
    %v1045 = vadd.f32 %v1043, %v1044
    %v1046 = vsel %vm886, %v582, 0.0
    %v1047 = vadd.f32 %v1045, %v1046
    %v1048 = vsel %vm886, %v583, 0.0
    %v1049 = vadd.f32 %v1047, %v1048
    %v1050 = vsel %vm886, %v584, 0.0
    %v1051 = vadd.f32 %v1049, %v1050
    %v1052 = vsel %vm886, %v585, 0.0
    %v1053 = vadd.f32 %v1051, %v1052
    %v1054 = vsel %vm886, %v586, 0.0
    %v1055 = vadd.f32 %v1053, %v1054
    %v1056 = vsel %vm886, %v587, 0.0
    %v1057 = vadd.f32 %v1055, %v1056
    %v1058 = vsel %vm886, %v588, 0.0
    %v1059 = vadd.f32 %v1057, %v1058
    %v1060 = vsel %vm886, %v589, 0.0
    %v1061 = vadd.f32 %v1059, %v1060
    %v1062 = vsel %vm886, %v590, 0.0
    %v1063 = vadd.f32 %v1061, %v1062
    %v1064 = vsel %vm886, %v591, 0.0
    %v1065 = vadd.f32 %v1063, %v1064
    %v1066 = vsel %vm886, %v592, 0.0
    %v1067 = vadd.f32 %v1065, %v1066
    %v1068 = vsel %vm886, %v593, 0.0
    %v1069 = vadd.f32 %v1067, %v1068
    %v1070 = vsel %vm886, %v594, 0.0
    %v1071 = vadd.f32 %v1069, %v1070
    %v1072 = vsel %vm886, %v595, 0.0
    %v1073 = vadd.f32 %v1071, %v1072
    %v1074 = vsel %vm886, %v596, 0.0
    %v1075 = vadd.f32 %v1073, %v1074
    %v1076 = vsel %vm886, %v597, 0.0
    %v1077 = vadd.f32 %v1075, %v1076
    %v1078 = vsel %vm886, %v598, 0.0
    %v1079 = vadd.f32 %v1077, %v1078
    %v1080 = vsel %vm886, %v599, 0.0
    %v1081 = vadd.f32 %v1079, %v1080
    %v1082 = vsel %vm886, %v600, 0.0
    %v1083 = vadd.f32 %v1081, %v1082
    %v1084 = vsel %vm886, %v601, 0.0
    %v1085 = vadd.f32 %v1083, %v1084
    %v1086 = vsel %vm886, %v602, 0.0
    %v1087 = vadd.f32 %v1085, %v1086
    %v1088 = vsel %vm886, %v603, 0.0
    %v1089 = vadd.f32 %v1087, %v1088
    %v1090 = vsel %vm886, %v604, 0.0
    %v1091 = vadd.f32 %v1089, %v1090
    %v1092 = vsel %vm886, %v605, 0.0
    %v1093 = vadd.f32 %v1091, %v1092
    %v1094 = vsel %vm886, %v606, 0.0
    %v1095 = vadd.f32 %v1093, %v1094
    %v1096 = vsel %vm886, %v607, 0.0
    %v1097 = vadd.f32 %v1095, %v1096
    %v1098 = vsel %vm886, %v608, 0.0
    %v1099 = vadd.f32 %v1097, %v1098
    %v1100 = vsel %vm886, %v609, 0.0
    %v1101 = vadd.f32 %v1099, %v1100
    %v1102 = vsel %vm886, %v610, 0.0
    %v1103 = vadd.f32 %v1101, %v1102
    %v1104 = vsel %vm886, %v611, 0.0
    %v1105 = vadd.f32 %v1103, %v1104
    %v1106 = vsel %vm886, %v612, 0.0
    %v1107 = vadd.f32 %v1105, %v1106
    %v1108 = vsel %vm886, %v613, 0.0
    %v1109 = vadd.f32 %v1107, %v1108
    %v1110 = vsel %vm886, %v614, 0.0
    %v1111 = vadd.f32 %v1109, %v1110
    %v1112 = vsel %vm886, %v615, 0.0
    %v1113 = vadd.f32 %v1111, %v1112
    %v1114 = vsel %vm886, %v616, 0.0
    %v1115 = vadd.f32 %v1113, %v1114
    %v1116 = vsel %vm886, %v617, 0.0
    %v1117 = vadd.f32 %v1115, %v1116
    %v1118 = vsel %vm886, %v618, 0.0
    %v1119 = vadd.f32 %v1117, %v1118
    %v1120 = vsel %vm886, %v619, 0.0
    %v1121 = vadd.f32 %v1119, %v1120
    %v1122 = vsel %vm886, %v620, 0.0
    %v1123 = vadd.f32 %v1121, %v1122
    %v1124 = vsel %vm886, %v621, 0.0
    %v1125 = vadd.f32 %v1123, %v1124
    %v1126 = vsel %vm886, %v622, 0.0
    %v1127 = vadd.f32 %v1125, %v1126
    %v1128 = vsel %vm886, %v623, 0.0
    %v1129 = vadd.f32 %v1127, %v1128
    %v1130 = vsel %vm886, %v624, 0.0
    %v1131 = vadd.f32 %v1129, %v1130
    %v1132 = vsel %vm886, %v625, 0.0
    %v1133 = vadd.f32 %v1131, %v1132
    %v1134 = vsel %vm886, %v626, 0.0
    %v1135 = vadd.f32 %v1133, %v1134
    %v1136 = vsel %vm886, %v627, 0.0
    %v1137 = vadd.f32 %v1135, %v1136
    %v1138 = vsel %vm886, %v628, 0.0
    %v1139 = vadd.f32 %v1137, %v1138
    %v1140 = vsel %vm886, %v629, 0.0
    %v1141 = vadd.f32 %v1139, %v1140
    %v1142 = vsel %vm886, %v630, 0.0
    %v1143 = vadd.f32 %v1141, %v1142
    %v1144 = vsel %vm886, %v631, 0.0
    %v1145 = vadd.f32 %v1143, %v1144
    %v1146 = vsel %vm886, %v632, 0.0
    %v1147 = vadd.f32 %v1145, %v1146
    %v1148 = vsel %vm886, %v633, 0.0
    %v1149 = vadd.f32 %v1147, %v1148
    %v1150 = vsel %vm886, %v634, 0.0
    %v1151 = vadd.f32 %v1149, %v1150
    %v1152 = vsel %vm886, %v635, 0.0
    %v1153 = vadd.f32 %v1151, %v1152
    %v1154 = vsel %vm886, %v636, 0.0
    %v1155 = vadd.f32 %v1153, %v1154
    %v1156 = vsel %vm886, %v637, 0.0
    %v1157 = vadd.f32 %v1155, %v1156
    %v1158 = vsel %vm886, %v638, 0.0
    %v1159 = vadd.f32 %v1157, %v1158
    %v1160 = vsel %vm886, %v639, 0.0
    %v1161 = vadd.f32 %v1159, %v1160
    %v1162 = vsel %vm886, %v640, 0.0
    %v1163 = vadd.f32 %v1161, %v1162
    %v1164 = vsel %vm886, %v641, 0.0
    %v1165 = vadd.f32 %v1163, %v1164
    %v1166 = vsel %vm886, %v642, 0.0
    %v1167 = vadd.f32 %v1165, %v1166
    %v1168 = vsel %vm886, %v643, 0.0
    %v1169 = vadd.f32 %v1167, %v1168
    %v1170 = vsel %vm886, %v644, 0.0
    %v1171 = vadd.f32 %v1169, %v1170
    %v1172 = vsel %vm886, %v645, 0.0
    %v1173 = vadd.f32 %v1171, %v1172
    %v1174 = vsel %vm886, %v646, 0.0
    %v1175 = vadd.f32 %v1173, %v1174
    %v1176 = vsel %vm886, %v647, 0.0
    %v1177 = vadd.f32 %v1175, %v1176
    %v1178 = vsel %vm886, %v648, 0.0
    %v1179 = vadd.f32 %v1177, %v1178
    %v1180 = vsel %vm886, %v649, 0.0
    %v1181 = vadd.f32 %v1179, %v1180
    %v1182 = vsel %vm886, %v650, 0.0
    %v1183 = vadd.f32 %v1181, %v1182
    %v1184 = vsel %vm886, %v651, 0.0
    %v1185 = vadd.f32 %v1183, %v1184
    %v1186 = vsel %vm886, %v652, 0.0
    %v1187 = vadd.f32 %v1185, %v1186
    %v1188 = vsel %vm886, %v653, 0.0
    %v1189 = vadd.f32 %v1187, %v1188
    %v1190 = vsel %vm886, %v654, 0.0
    %v1191 = vadd.f32 %v1189, %v1190
    %v1192 = vsel %vm886, %v655, 0.0
    %v1193 = vadd.f32 %v1191, %v1192
    %v1194 = vsel %vm886, %v656, 0.0
    %v1195 = vadd.f32 %v1193, %v1194
    %v1196 = vsel %vm886, %v657, 0.0
    %v1197 = vadd.f32 %v1195, %v1196
    %v1198 = vsel %vm886, %v658, 0.0
    %v1199 = vadd.f32 %v1197, %v1198
    %v1200 = vsel %vm886, %v659, 0.0
    %v1201 = vadd.f32 %v1199, %v1200
    %v1202 = vsel %vm886, %v660, 0.0
    %v1203 = vadd.f32 %v1201, %v1202
    %v1204 = vsel %vm886, %v661, 0.0
    %v1205 = vadd.f32 %v1203, %v1204
    %v1206 = vsel %vm886, %v662, 0.0
    %v1207 = vadd.f32 %v1205, %v1206
    %v1208 = vsel %vm886, %v663, 0.0
    %v1209 = vadd.f32 %v1207, %v1208
    %v1210 = vsel %vm886, %v664, 0.0
    %v1211 = vadd.f32 %v1209, %v1210
    %v1212 = vsel %vm886, %v665, 0.0
    %v1213 = vadd.f32 %v1211, %v1212
    %v1214 = vsel %vm886, %v666, 0.0
    %v1215 = vadd.f32 %v1213, %v1214
    %v1216 = vsel %vm886, %v667, 0.0
    %v1217 = vadd.f32 %v1215, %v1216
    %v1218 = vsel %vm886, %v668, 0.0
    %v1219 = vadd.f32 %v1217, %v1218
    %v1220 = vsel %vm886, %v669, 0.0
    %v1221 = vadd.f32 %v1219, %v1220
    %v1222 = vsel %vm886, %v670, 0.0
    %v1223 = vadd.f32 %v1221, %v1222
    %v1224 = vsel %vm886, %v671, 0.0
    %v1225 = vadd.f32 %v1223, %v1224
    %v1226 = vsel %vm886, %v672, 0.0
    %v1227 = vadd.f32 %v1225, %v1226
    %v1228 = vsel %vm886, %v673, 0.0
    %v1229 = vadd.f32 %v1227, %v1228
    %v1230 = vsel %vm886, %v674, 0.0
    %v1231 = vadd.f32 %v1229, %v1230
    %v1232 = vsel %vm886, %v675, 0.0
    %v1233 = vadd.f32 %v1231, %v1232
    %v1234 = vsel %vm886, %v676, 0.0
    %v1235 = vadd.f32 %v1233, %v1234
    %v1236 = vsel %vm886, %v677, 0.0
    %v1237 = vadd.f32 %v1235, %v1236
    %v1238 = vsel %vm886, %v678, 0.0
    %v1239 = vadd.f32 %v1237, %v1238
    %v1240 = vsel %vm886, %v679, 0.0
    %v1241 = vadd.f32 %v1239, %v1240
    %v1242 = vsel %vm886, %v680, 0.0
    %v1243 = vadd.f32 %v1241, %v1242
    %v1244 = vsel %vm886, %v681, 0.0
    %v1245 = vadd.f32 %v1243, %v1244
    %v1246 = vsel %vm886, %v682, 0.0
    %v1247 = vadd.f32 %v1245, %v1246
    %v1248 = vsel %vm886, %v683, 0.0
    %v1249 = vadd.f32 %v1247, %v1248
    %v1250 = vsel %vm886, %v684, 0.0
    %v1251 = vadd.f32 %v1249, %v1250
    %v1252 = vsel %vm886, %v685, 0.0
    %v1253 = vadd.f32 %v1251, %v1252
    %v1254 = vsel %vm886, %v686, 0.0
    %v1255 = vadd.f32 %v1253, %v1254
    %v1256 = vsel %vm886, %v687, 0.0
    %v1257 = vadd.f32 %v1255, %v1256
    %v1258 = vsel %vm886, %v688, 0.0
    %v1259 = vadd.f32 %v1257, %v1258
    %v1260 = vsel %vm886, %v689, 0.0
    %v1261 = vadd.f32 %v1259, %v1260
    %v1262 = vsel %vm886, %v690, 0.0
    %v1263 = vadd.f32 %v1261, %v1262
    %v1264 = vsel %vm886, %v691, 0.0
    %v1265 = vadd.f32 %v1263, %v1264
    %v1266 = vsel %vm886, %v692, 0.0
    %v1267 = vadd.f32 %v1265, %v1266
    %v1268 = vsel %vm886, %v693, 0.0
    %v1269 = vadd.f32 %v1267, %v1268
    %v1270 = vsel %vm886, %v694, 0.0
    %v1271 = vadd.f32 %v1269, %v1270
    %v1272 = vsel %vm886, %v695, 0.0
    %v1273 = vadd.f32 %v1271, %v1272
    %v1274 = vsel %vm886, %v696, 0.0
    %v1275 = vadd.f32 %v1273, %v1274
    %v1276 = vsel %vm886, %v697, 0.0
    %v1277 = vadd.f32 %v1275, %v1276
    %v1278 = vsel %vm886, %v698, 0.0
    %v1279 = vadd.f32 %v1277, %v1278
    %v1280 = vsel %vm886, %v699, 0.0
    %v1281 = vadd.f32 %v1279, %v1280
    %v1282 = vsel %vm886, %v700, 0.0
    %v1283 = vadd.f32 %v1281, %v1282
    %v1284 = vsel %vm886, %v701, 0.0
    %v1285 = vadd.f32 %v1283, %v1284
    %v1286 = vsel %vm886, %v702, 0.0
    %v1287 = vadd.f32 %v1285, %v1286
    %v1288 = vsel %vm886, %v703, 0.0
    %v1289 = vadd.f32 %v1287, %v1288
    %v1290 = vsel %vm886, %v704, 0.0
    %v1291 = vadd.f32 %v1289, %v1290
    %v1292 = vsel %vm886, %v705, 0.0
    %v1293 = vadd.f32 %v1291, %v1292
    %v1294 = vsel %vm886, %v706, 0.0
    %v1295 = vadd.f32 %v1293, %v1294
    %v1296 = vsel %vm886, %v707, 0.0
    %v1297 = vadd.f32 %v1295, %v1296
    %v1298 = vsel %vm886, %v708, 0.0
    %v1299 = vadd.f32 %v1297, %v1298
    %v1300 = vsel %vm886, %v709, 0.0
    %v1301 = vadd.f32 %v1299, %v1300
    %v1302 = vsel %vm886, %v710, 0.0
    %v1303 = vadd.f32 %v1301, %v1302
    %v1304 = vsel %vm886, %v711, 0.0
    %v1305 = vadd.f32 %v1303, %v1304
    %v1306 = vsel %vm886, %v712, 0.0
    %v1307 = vadd.f32 %v1305, %v1306
    %v1308 = vsel %vm886, %v713, 0.0
    %v1309 = vadd.f32 %v1307, %v1308
    %v1310 = vsel %vm886, %v714, 0.0
    %v1311 = vadd.f32 %v1309, %v1310
    %v1312 = vsel %vm886, %v715, 0.0
    %v1313 = vadd.f32 %v1311, %v1312
    %v1314 = vsel %vm886, %v716, 0.0
    %v1315 = vadd.f32 %v1313, %v1314
    %v1316 = vsel %vm886, %v717, 0.0
    %v1317 = vadd.f32 %v1315, %v1316
    %v1318 = vsel %vm886, %v718, 0.0
    %v1319 = vadd.f32 %v1317, %v1318
    %v1320 = vsel %vm886, %v719, 0.0
    %v1321 = vadd.f32 %v1319, %v1320
    %v1322 = vsel %vm886, %v720, 0.0
    %v1323 = vadd.f32 %v1321, %v1322
    %v1324 = vsel %vm886, %v721, 0.0
    %v1325 = vadd.f32 %v1323, %v1324
    %v1326 = vsel %vm886, %v722, 0.0
    %v1327 = vadd.f32 %v1325, %v1326
    %v1328 = vsel %vm886, %v723, 0.0
    %v1329 = vadd.f32 %v1327, %v1328
    %v1330 = vsel %vm886, %v724, 0.0
    %v1331 = vadd.f32 %v1329, %v1330
    %v1332 = vsel %vm886, %v725, 0.0
    %v1333 = vadd.f32 %v1331, %v1332
    %v1334 = vsel %vm886, %v726, 0.0
    %v1335 = vadd.f32 %v1333, %v1334
    %v1336 = vsel %vm886, %v727, 0.0
    %v1337 = vadd.f32 %v1335, %v1336
    %v1338 = vsel %vm886, %v728, 0.0
    %v1339 = vadd.f32 %v1337, %v1338
    %v1340 = vsel %vm886, %v729, 0.0
    %v1341 = vadd.f32 %v1339, %v1340
    %v1342 = vsel %vm886, %v730, 0.0
    %v1343 = vadd.f32 %v1341, %v1342
    %v1344 = vsel %vm886, %v731, 0.0
    %v1345 = vadd.f32 %v1343, %v1344
    %v1346 = vsel %vm886, %v732, 0.0
    %v1347 = vadd.f32 %v1345, %v1346
    %v1348 = vsel %vm886, %v733, 0.0
    %v1349 = vadd.f32 %v1347, %v1348
    %v1350 = vsel %vm886, %v734, 0.0
    %v1351 = vadd.f32 %v1349, %v1350
    %v1352 = vsel %vm886, %v735, 0.0
    %v1353 = vadd.f32 %v1351, %v1352
    %v1354 = vsel %vm886, %v736, 0.0
    %v1355 = vadd.f32 %v1353, %v1354
    %v1356 = vsel %vm886, %v737, 0.0
    %v1357 = vadd.f32 %v1355, %v1356
    %v1358 = vsel %vm886, %v738, 0.0
    %v1359 = vadd.f32 %v1357, %v1358
    %v1360 = vsel %vm886, %v739, 0.0
    %v1361 = vadd.f32 %v1359, %v1360
    %v1362 = vsel %vm886, %v740, 0.0
    %v1363 = vadd.f32 %v1361, %v1362
    %v1364 = vsel %vm886, %v741, 0.0
    %v1365 = vadd.f32 %v1363, %v1364
    %v1366 = vsel %vm886, %v742, 0.0
    %v1367 = vadd.f32 %v1365, %v1366
    %v1368 = vsel %vm886, %v743, 0.0
    %v1369 = vadd.f32 %v1367, %v1368
    %v1370 = vsel %vm886, %v744, 0.0
    %v1371 = vadd.f32 %v1369, %v1370
    %v1372 = vsel %vm886, %v745, 0.0
    %v1373 = vadd.f32 %v1371, %v1372
    %v1374 = vsel %vm886, %v746, 0.0
    %v1375 = vadd.f32 %v1373, %v1374
    %v1376 = vsel %vm886, %v747, 0.0
    %v1377 = vadd.f32 %v1375, %v1376
    %v1378 = vsel %vm886, %v748, 0.0
    %v1379 = vadd.f32 %v1377, %v1378
    %v1380 = vsel %vm886, %v749, 0.0
    %v1381 = vadd.f32 %v1379, %v1380
    %v1382 = vsel %vm886, %v750, 0.0
    %v1383 = vadd.f32 %v1381, %v1382
    %v1384 = vsel %vm886, %v751, 0.0
    %v1385 = vadd.f32 %v1383, %v1384
    %v1386 = vsel %vm886, %v752, 0.0
    %v1387 = vadd.f32 %v1385, %v1386
    %v1388 = vsel %vm886, %v753, 0.0
    %v1389 = vadd.f32 %v1387, %v1388
    %v1390 = vsel %vm886, %v754, 0.0
    %v1391 = vadd.f32 %v1389, %v1390
    %v1392 = vsel %vm886, %v755, 0.0
    %v1393 = vadd.f32 %v1391, %v1392
    %v1394 = vsel %vm886, %v756, 0.0
    %v1395 = vadd.f32 %v1393, %v1394
    %v1396 = vsel %vm886, %v757, 0.0
    %v1397 = vadd.f32 %v1395, %v1396
    %v1398 = vsel %vm886, %v758, 0.0
    %v1399 = vadd.f32 %v1397, %v1398
    %v1400 = vsel %vm886, %v759, 0.0
    %v1401 = vadd.f32 %v1399, %v1400
    %v1402 = vsel %vm886, %v760, 0.0
    %v1403 = vadd.f32 %v1401, %v1402
    %v1404 = vsel %vm886, %v761, 0.0
    %v1405 = vadd.f32 %v1403, %v1404
    %v1406 = vsel %vm886, %v762, 0.0
    %v1407 = vadd.f32 %v1405, %v1406
    %v1408 = vsel %vm886, %v763, 0.0
    %v1409 = vadd.f32 %v1407, %v1408
    %v1410 = vsel %vm886, %v764, 0.0
    %v1411 = vadd.f32 %v1409, %v1410
    %v1412 = vsel %vm886, %v765, 0.0
    %v1413 = vadd.f32 %v1411, %v1412
    %v1414 = vsel %vm886, %v766, 0.0
    %v1415 = vadd.f32 %v1413, %v1414
    %v1416 = vsel %vm886, %v767, 0.0
    %v1417 = vadd.f32 %v1415, %v1416
    %v1418 = vsel %vm886, %v768, 0.0
    %v1419 = vadd.f32 %v1417, %v1418
    %v1420 = vsel %vm886, %v769, 0.0
    %v1421 = vadd.f32 %v1419, %v1420
    %v1422 = vsel %vm886, %v770, 0.0
    %v1423 = vadd.f32 %v1421, %v1422
    %v1424 = vsel %vm886, %v771, 0.0
    %v1425 = vadd.f32 %v1423, %v1424
    %v1426 = vsel %vm886, %v772, 0.0
    %v1427 = vadd.f32 %v1425, %v1426
    %v1428 = vsel %vm886, %v773, 0.0
    %v1429 = vadd.f32 %v1427, %v1428
    %v1430 = vsel %vm886, %v774, 0.0
    %v1431 = vadd.f32 %v1429, %v1430
    %v1432 = vsel %vm886, %v775, 0.0
    %v1433 = vadd.f32 %v1431, %v1432
    %v1434 = vsel %vm886, %v776, 0.0
    %v1435 = vadd.f32 %v1433, %v1434
    %v1436 = vsel %vm886, %v777, 0.0
    %v1437 = vadd.f32 %v1435, %v1436
    %v1438 = vsel %vm886, %v778, 0.0
    %v1439 = vadd.f32 %v1437, %v1438
    %v1440 = vsel %vm886, %v779, 0.0
    %v1441 = vadd.f32 %v1439, %v1440
    %v1442 = vsel %vm886, %v780, 0.0
    %v1443 = vadd.f32 %v1441, %v1442
    %v1444 = vsel %vm886, %v781, 0.0
    %v1445 = vadd.f32 %v1443, %v1444
    %v1446 = vsel %vm886, %v782, 0.0
    %v1447 = vadd.f32 %v1445, %v1446
    %v1448 = vsel %vm886, %v783, 0.0
    %v1449 = vadd.f32 %v1447, %v1448
    %v1450 = vsel %vm886, %v784, 0.0
    %v1451 = vadd.f32 %v1449, %v1450
    %v1452 = vsel %vm886, %v785, 0.0
    %v1453 = vadd.f32 %v1451, %v1452
    %v1454 = vsel %vm886, %v786, 0.0
    %v1455 = vadd.f32 %v1453, %v1454
    %v1456 = vsel %vm886, %v787, 0.0
    %v1457 = vadd.f32 %v1455, %v1456
    %v1458 = vsel %vm886, %v788, 0.0
    %v1459 = vadd.f32 %v1457, %v1458
    %v1460 = vsel %vm886, %v789, 0.0
    %v1461 = vadd.f32 %v1459, %v1460
    %v1462 = vsel %vm886, %v790, 0.0
    %v1463 = vadd.f32 %v1461, %v1462
    %v1464 = vsel %vm886, %v791, 0.0
    %v1465 = vadd.f32 %v1463, %v1464
    %v1466 = vsel %vm886, %v792, 0.0
    %v1467 = vadd.f32 %v1465, %v1466
    %v1468 = vsel %vm886, %v793, 0.0
    %v1469 = vadd.f32 %v1467, %v1468
    %v1470 = vsel %vm886, %v794, 0.0
    %v1471 = vadd.f32 %v1469, %v1470
    %v1472 = vsel %vm886, %v795, 0.0
    %v1473 = vadd.f32 %v1471, %v1472
    %v1474 = vsel %vm886, %v796, 0.0
    %v1475 = vadd.f32 %v1473, %v1474
    %v1476 = vsel %vm886, %v797, 0.0
    %v1477 = vadd.f32 %v1475, %v1476
    %v1478 = vsel %vm886, %v798, 0.0
    %v1479 = vadd.f32 %v1477, %v1478
    %v1480 = vsel %vm886, %v799, 0.0
    %v1481 = vadd.f32 %v1479, %v1480
    %v1482 = vsel %vm886, %v800, 0.0
    %v1483 = vadd.f32 %v1481, %v1482
    %v1484 = vsel %vm886, %v801, 0.0
    %v1485 = vadd.f32 %v1483, %v1484
    %v1486 = vsel %vm886, %v802, 0.0
    %v1487 = vadd.f32 %v1485, %v1486
    %v1488 = vsel %vm886, %v803, 0.0
    %v1489 = vadd.f32 %v1487, %v1488
    %v1490 = vsel %vm886, %v804, 0.0
    %v1491 = vadd.f32 %v1489, %v1490
    %v1492 = vsel %vm886, %v805, 0.0
    %v1493 = vadd.f32 %v1491, %v1492
    %v1494 = vsel %vm886, %v806, 0.0
    %v1495 = vadd.f32 %v1493, %v1494
    %v1496 = vsel %vm886, %v807, 0.0
    %v1497 = vadd.f32 %v1495, %v1496
    %v1498 = vsel %vm886, %v808, 0.0
    %v1499 = vadd.f32 %v1497, %v1498
    %v1500 = vsel %vm886, %v809, 0.0
    %v1501 = vadd.f32 %v1499, %v1500
    %v1502 = vsel %vm886, %v810, 0.0
    %v1503 = vadd.f32 %v1501, %v1502
    %v1504 = vsel %vm886, %v811, 0.0
    %v1505 = vadd.f32 %v1503, %v1504
    %v1506 = vsel %vm886, %v812, 0.0
    %v1507 = vadd.f32 %v1505, %v1506
    %v1508 = vsel %vm886, %v813, 0.0
    %v1509 = vadd.f32 %v1507, %v1508
    %v1510 = vsel %vm886, %v814, 0.0
    %v1511 = vadd.f32 %v1509, %v1510
    %v1512 = vsel %vm886, %v815, 0.0
    %v1513 = vadd.f32 %v1511, %v1512
    %v1514 = vsel %vm886, %v816, 0.0
    %v1515 = vadd.f32 %v1513, %v1514
    %v1516 = vsel %vm886, %v817, 0.0
    %v1517 = vadd.f32 %v1515, %v1516
    %v1518 = vsel %vm886, %v818, 0.0
    %v1519 = vadd.f32 %v1517, %v1518
    %v1520 = vsel %vm886, %v819, 0.0
    %v1521 = vadd.f32 %v1519, %v1520
    %v1522 = vsel %vm886, %v820, 0.0
    %v1523 = vadd.f32 %v1521, %v1522
    %v1524 = vsel %vm886, %v821, 0.0
    %v1525 = vadd.f32 %v1523, %v1524
    %v1526 = vsel %vm886, %v822, 0.0
    %v1527 = vadd.f32 %v1525, %v1526
    %v1528 = vsel %vm886, %v823, 0.0
    %v1529 = vadd.f32 %v1527, %v1528
    %v1530 = vsel %vm886, %v824, 0.0
    %v1531 = vadd.f32 %v1529, %v1530
    %v1532 = vsel %vm886, %v825, 0.0
    %v1533 = vadd.f32 %v1531, %v1532
    %v1534 = vsel %vm886, %v826, 0.0
    %v1535 = vadd.f32 %v1533, %v1534
    %v1536 = vsel %vm886, %v827, 0.0
    %v1537 = vadd.f32 %v1535, %v1536
    %v1538 = vsel %vm886, %v828, 0.0
    %v1539 = vadd.f32 %v1537, %v1538
    %v1540 = vsel %vm886, %v829, 0.0
    %v1541 = vadd.f32 %v1539, %v1540
    %v1542 = vsel %vm886, %v830, 0.0
    %v1543 = vadd.f32 %v1541, %v1542
    %v1544 = vsel %vm886, %v831, 0.0
    %v1545 = vadd.f32 %v1543, %v1544
    %v1546 = vsel %vm886, %v832, 0.0
    %v1547 = vadd.f32 %v1545, %v1546
    %v1548 = vsel %vm886, %v833, 0.0
    %v1549 = vadd.f32 %v1547, %v1548
    %v1550 = vsel %vm886, %v834, 0.0
    %v1551 = vadd.f32 %v1549, %v1550
    %v1552 = vsel %vm886, %v835, 0.0
    %v1553 = vadd.f32 %v1551, %v1552
    %v1554 = vsel %vm886, %v836, 0.0
    %v1555 = vadd.f32 %v1553, %v1554
    %v1556 = vsel %vm886, %v837, 0.0
    %v1557 = vadd.f32 %v1555, %v1556
    %v1558 = vsel %vm886, %v838, 0.0
    %v1559 = vadd.f32 %v1557, %v1558
    %v1560 = vsel %vm886, %v839, 0.0
    %v1561 = vadd.f32 %v1559, %v1560
    %v1562 = vsel %vm886, %v840, 0.0
    %v1563 = vadd.f32 %v1561, %v1562
    %v1564 = vsel %vm886, %v841, 0.0
    %v1565 = vadd.f32 %v1563, %v1564
    %v1566 = vsel %vm886, %v842, 0.0
    %v1567 = vadd.f32 %v1565, %v1566
    %v1568 = vsel %vm886, %v843, 0.0
    %v1569 = vadd.f32 %v1567, %v1568
    %v1570 = vsel %vm886, %v844, 0.0
    %v1571 = vadd.f32 %v1569, %v1570
    %v1572 = vsel %vm886, %v845, 0.0
    %v1573 = vadd.f32 %v1571, %v1572
    %v1574 = vsel %vm886, %v846, 0.0
    %v1575 = vadd.f32 %v1573, %v1574
    %v1576 = vsel %vm886, %v847, 0.0
    %v1577 = vadd.f32 %v1575, %v1576
    %v1578 = vsel %vm886, %v848, 0.0
    %v1579 = vadd.f32 %v1577, %v1578
    %v1580 = vsel %vm886, %v849, 0.0
    %v1581 = vadd.f32 %v1579, %v1580
    %v1582 = vsel %vm886, %v850, 0.0
    %v1583 = vadd.f32 %v1581, %v1582
    %v1584 = vsel %vm886, %v851, 0.0
    %v1585 = vadd.f32 %v1583, %v1584
    %v1586 = vsel %vm886, %v852, 0.0
    %v1587 = vadd.f32 %v1585, %v1586
    %v1588 = vsel %vm886, %v853, 0.0
    %v1589 = vadd.f32 %v1587, %v1588
    %v1590 = vsel %vm886, %v854, 0.0
    %v1591 = vadd.f32 %v1589, %v1590
    %v1592 = vsel %vm886, %v855, 0.0
    %v1593 = vadd.f32 %v1591, %v1592
    %v1594 = vsel %vm886, %v856, 0.0
    %v1595 = vadd.f32 %v1593, %v1594
    %v1596 = vsel %vm886, %v857, 0.0
    %v1597 = vadd.f32 %v1595, %v1596
    %v1598 = vsel %vm886, %v858, 0.0
    %v1599 = vadd.f32 %v1597, %v1598
    %v1600 = vsel %vm886, %v859, 0.0
    %v1601 = vadd.f32 %v1599, %v1600
    %v1602 = vsel %vm886, %v860, 0.0
    %v1603 = vadd.f32 %v1601, %v1602
    %v1604 = vsel %vm886, %v861, 0.0
    %v1605 = vadd.f32 %v1603, %v1604
    %v1606 = vsel %vm886, %v862, 0.0
    %v1607 = vadd.f32 %v1605, %v1606
    %v1608 = vsel %vm886, %v863, 0.0
    %v1609 = vadd.f32 %v1607, %v1608
    %v1610 = vsel %vm886, %v864, 0.0
    %v1611 = vadd.f32 %v1609, %v1610
    %v1612 = vsel %vm886, %v865, 0.0
    %v1613 = vadd.f32 %v1611, %v1612
    %v1614 = vsel %vm886, %v866, 0.0
    %v1615 = vadd.f32 %v1613, %v1614
    %v1616 = vsel %vm886, %v867, 0.0
    %v1617 = vadd.f32 %v1615, %v1616
    %v1618 = vsel %vm886, %v868, 0.0
    %v1619 = vadd.f32 %v1617, %v1618
    %v1620 = vsel %vm886, %v869, 0.0
    %v1621 = vadd.f32 %v1619, %v1620
    %v1622 = vsel %vm886, %v870, 0.0
    %v1623 = vadd.f32 %v1621, %v1622
    %v1624 = vsel %vm886, %v871, 0.0
    %v1625 = vadd.f32 %v1623, %v1624
    %v1626 = vsel %vm886, %v872, 0.0
    %v1627 = vadd.f32 %v1625, %v1626
    %v1628 = vsel %vm886, %v873, 0.0
    %v1629 = vadd.f32 %v1627, %v1628
    %v1630 = vsel %vm886, %v874, 0.0
    %v1631 = vadd.f32 %v1629, %v1630
    %v1632 = vsel %vm886, %v875, 0.0
    %v1633 = vadd.f32 %v1631, %v1632
    %v1634 = vsel %vm886, %v876, 0.0
    %v1635 = vadd.f32 %v1633, %v1634
    %v1636 = vsel %vm886, %v877, 0.0
    %v1637 = vadd.f32 %v1635, %v1636
    %v1638 = vsel %vm886, %v878, 0.0
    %v1639 = vadd.f32 %v1637, %v1638
    %v1640 = vsel %vm886, %v879, 0.0
    %v1641 = vadd.f32 %v1639, %v1640
    %v1642 = vsel %vm886, %v880, 0.0
    %v1643 = vadd.f32 %v1641, %v1642
    %v1644 = vsel %vm886, %v881, 0.0
    %v1645 = vadd.f32 %v1643, %v1644
    %v1646 = vsel %vm886, %v882, 0.0
    %v1647 = vadd.f32 %v1645, %v1646
    %v1648 = vsel %vm886, %v883, 0.0
    %v1649 = vadd.f32 %v1647, %v1648
    %v1650 = vsel %vm886, %v884, 0.0
    %v1651 = vadd.f32 %v1649, %v1650
    %v1652 = vsel %vm886, %v885, 0.0
    %v1653 = vadd.f32 %v1651, %v1652
    %v1654 = vrot.slane %v1653, 4
    %v1655 = vadd.f32 %v1653, %v1654
    %v1656 = vrot.slane %v1655, 2
    %v1657 = vadd.f32 %v1655, %v1656
    %v1658 = vrot.slane %v1657, 1
    %v1659 = vadd.f32 %v1657, %v1658
    %v1660 = vmax.f32 %v1659, 1e-24
    %v1661 = vrsqrt.pop %v1660
    %v1662 = vmul.f32 %v42, %v1661
    %v1663 = vmul.f32 %v43, %v1661
    %v1664 = vmul.f32 %v44, %v1661
    %v1665 = vmul.f32 %v45, %v1661
    %v1666 = vmul.f32 %v46, %v1661
    %v1667 = vmul.f32 %v47, %v1661
    %v1668 = vmul.f32 %v48, %v1661
    %v1669 = vmul.f32 %v49, %v1661
    %v1670 = vmul.f32 %v50, %v1661
    %v1671 = vmul.f32 %v51, %v1661
    %v1672 = vmul.f32 %v52, %v1661
    %v1673 = vmul.f32 %v53, %v1661
    %v1674 = vmul.f32 %v54, %v1661
    %v1675 = vmul.f32 %v55, %v1661
    %v1676 = vmul.f32 %v56, %v1661
    %v1677 = vmul.f32 %v57, %v1661
    %v1678 = vmul.f32 %v58, %v1661
    %v1679 = vmul.f32 %v59, %v1661
    %v1680 = vmul.f32 %v60, %v1661
    %v1681 = vmul.f32 %v61, %v1661
    %v1682 = vmul.f32 %v62, %v1661
    %v1683 = vmul.f32 %v63, %v1661
    %v1684 = vmul.f32 %v64, %v1661
    %v1685 = vmul.f32 %v65, %v1661
    %v1686 = vmul.f32 %v66, %v1661
    %v1687 = vmul.f32 %v67, %v1661
    %v1688 = vmul.f32 %v68, %v1661
    %v1689 = vmul.f32 %v69, %v1661
    %v1690 = vmul.f32 %v70, %v1661
    %v1691 = vmul.f32 %v71, %v1661
    %v1692 = vmul.f32 %v72, %v1661
    %v1693 = vmul.f32 %v73, %v1661
    %v1694 = vmul.f32 %v74, %v1661
    %v1695 = vmul.f32 %v75, %v1661
    %v1696 = vmul.f32 %v76, %v1661
    %v1697 = vmul.f32 %v77, %v1661
    %v1698 = vmul.f32 %v78, %v1661
    %v1699 = vmul.f32 %v79, %v1661
    %v1700 = vmul.f32 %v80, %v1661
    %v1701 = vmul.f32 %v81, %v1661
    %v1702 = vmul.f32 %v82, %v1661
    %v1703 = vmul.f32 %v83, %v1661
    %v1704 = vmul.f32 %v84, %v1661
    %v1705 = vmul.f32 %v85, %v1661
    %v1706 = vmul.f32 %v86, %v1661
    %v1707 = vmul.f32 %v87, %v1661
    %v1708 = vmul.f32 %v88, %v1661
    %v1709 = vmul.f32 %v89, %v1661
    %v1710 = vmul.f32 %v90, %v1661
    %v1711 = vmul.f32 %v91, %v1661
    %v1712 = vmul.f32 %v92, %v1661
    %v1713 = vmul.f32 %v93, %v1661
    %v1714 = vmul.f32 %v94, %v1661
    %v1715 = vmul.f32 %v95, %v1661
    %v1716 = vmul.f32 %v96, %v1661
    %v1717 = vmul.f32 %v97, %v1661
    %v1718 = vmul.f32 %v98, %v1661
    %v1719 = vmul.f32 %v99, %v1661
    %v1720 = vmul.f32 %v100, %v1661
    %v1721 = vmul.f32 %v101, %v1661
    %v1722 = vmul.f32 %v102, %v1661
    %v1723 = vmul.f32 %v103, %v1661
    %v1724 = vmul.f32 %v104, %v1661
    %v1725 = vmul.f32 %v105, %v1661
    %v1726 = vmul.f32 %v106, %v1661
    %v1727 = vmul.f32 %v107, %v1661
    %v1728 = vmul.f32 %v108, %v1661
    %v1729 = vmul.f32 %v109, %v1661
    %v1730 = vmul.f32 %v110, %v1661
    %v1731 = vmul.f32 %v111, %v1661
    %v1732 = vmul.f32 %v112, %v1661
    %v1733 = vmul.f32 %v113, %v1661
    %v1734 = vmul.f32 %v114, %v1661
    %v1735 = vmul.f32 %v115, %v1661
    %v1736 = vmul.f32 %v116, %v1661
    %v1737 = vmul.f32 %v117, %v1661
    %v1738 = vmul.f32 %v118, %v1661
    %v1739 = vmul.f32 %v119, %v1661
    %v1740 = vmul.f32 %v120, %v1661
    %v1741 = vmul.f32 %v121, %v1661
    %v1742 = vmul.f32 %v122, %v1661
    %v1743 = vmul.f32 %v123, %v1661
    %v1744 = vmul.f32 %v124, %v1661
    %v1745 = vmul.f32 %v125, %v1661
    %v1746 = vmul.f32 %v126, %v1661
    %v1747 = vmul.f32 %v127, %v1661
    %v1748 = vmul.f32 %v128, %v1661
    %v1749 = vmul.f32 %v129, %v1661
    %v1750 = vmul.f32 %v130, %v1661
    %v1751 = vmul.f32 %v131, %v1661
    %v1752 = vmul.f32 %v132, %v1661
    %v1753 = vmul.f32 %v133, %v1661
    %v1754 = vmul.f32 %v134, %v1661
    %v1755 = vmul.f32 %v135, %v1661
    %v1756 = vmul.f32 %v136, %v1661
    %v1757 = vmul.f32 %v137, %v1661
    %v1758 = vmul.f32 %v138, %v1661
    %v1759 = vmul.f32 %v139, %v1661
    %v1760 = vmul.f32 %v140, %v1661
    %v1761 = vmul.f32 %v141, %v1661
    %v1762 = vmul.f32 %v142, %v1661
    %v1763 = vmul.f32 %v143, %v1661
    %v1764 = vmul.f32 %v144, %v1661
    %v1765 = vmul.f32 %v145, %v1661
    %v1766 = vmul.f32 %v146, %v1661
    %v1767 = vmul.f32 %v147, %v1661
    %v1768 = vmul.f32 %v148, %v1661
    %v1769 = vmul.f32 %v149, %v1661
    %v1770 = vmul.f32 %v150, %v1661
    %v1771 = vmul.f32 %v151, %v1661
    %v1772 = vmul.f32 %v152, %v1661
    %v1773 = vmul.f32 %v153, %v1661
    %v1774 = vmul.f32 %v154, %v1661
    %v1775 = vmul.f32 %v155, %v1661
    %v1776 = vmul.f32 %v156, %v1661
    %v1777 = vmul.f32 %v157, %v1661
    %v1778 = vmul.f32 %v158, %v1661
    %v1779 = vmul.f32 %v159, %v1661
    %v1780 = vmul.f32 %v160, %v1661
    %v1781 = vmul.f32 %v161, %v1661
    %v1782 = vmul.f32 %v162, %v1661
    %v1783 = vmul.f32 %v163, %v1661
    %v1784 = vmul.f32 %v164, %v1661
    %v1785 = vmul.f32 %v165, %v1661
    %v1786 = vmul.f32 %v166, %v1661
    %v1787 = vmul.f32 %v167, %v1661
    %v1788 = vmul.f32 %v168, %v1661
    %v1789 = vmul.f32 %v169, %v1661
    %v1790 = vmul.f32 %v170, %v1661
    %v1791 = vmul.f32 %v171, %v1661
    %v1792 = vmul.f32 %v172, %v1661
    %v1793 = vmul.f32 %v173, %v1661
    %v1794 = vmul.f32 %v174, %v1661
    %v1795 = vmul.f32 %v175, %v1661
    %v1796 = vmul.f32 %v176, %v1661
    %v1797 = vmul.f32 %v177, %v1661
    %v1798 = vmul.f32 %v178, %v1661
    %v1799 = vmul.f32 %v179, %v1661
    %v1800 = vmul.f32 %v180, %v1661
    %v1801 = vmul.f32 %v181, %v1661
    %v1802 = vmul.f32 %v182, %v1661
    %v1803 = vmul.f32 %v183, %v1661
    %v1804 = vmul.f32 %v184, %v1661
    %v1805 = vmul.f32 %v185, %v1661
    %v1806 = vmul.f32 %v186, %v1661
    %v1807 = vmul.f32 %v187, %v1661
    %v1808 = vmul.f32 %v188, %v1661
    %v1809 = vmul.f32 %v189, %v1661
    %v1810 = vmul.f32 %v190, %v1661
    %v1811 = vmul.f32 %v191, %v1661
    %v1812 = vmul.f32 %v192, %v1661
    %v1813 = vmul.f32 %v193, %v1661
    %v1814 = vmul.f32 %v194, %v1661
    %v1815 = vmul.f32 %v195, %v1661
    %v1816 = vmul.f32 %v196, %v1661
    %v1817 = vmul.f32 %v197, %v1661
    %v1818 = vmul.f32 %v198, %v1661
    %v1819 = vmul.f32 %v199, %v1661
    %v1820 = vmul.f32 %v200, %v1661
    %v1821 = vmul.f32 %v201, %v1661
    %v1822 = vmul.f32 %v202, %v1661
    %v1823 = vmul.f32 %v203, %v1661
    %v1824 = vmul.f32 %v204, %v1661
    %v1825 = vmul.f32 %v205, %v1661
    %v1826 = vmul.f32 %v206, %v1661
    %v1827 = vmul.f32 %v207, %v1661
    %v1828 = vmul.f32 %v208, %v1661
    %v1829 = vmul.f32 %v209, %v1661
    %v1830 = vmul.f32 %v210, %v1661
    %v1831 = vmul.f32 %v211, %v1661
    %v1832 = vmul.f32 %v212, %v1661
    %v1833 = vmul.f32 %v213, %v1661
    %v1834 = vmul.f32 %v214, %v1661
    %v1835 = vmul.f32 %v215, %v1661
    %v1836 = vmul.f32 %v216, %v1661
    %v1837 = vmul.f32 %v217, %v1661
    %v1838 = vmul.f32 %v218, %v1661
    %v1839 = vmul.f32 %v219, %v1661
    %v1840 = vmul.f32 %v220, %v1661
    %v1841 = vmul.f32 %v221, %v1661
    %v1842 = vmul.f32 %v222, %v1661
    %v1843 = vmul.f32 %v223, %v1661
    %v1844 = vmul.f32 %v224, %v1661
    %v1845 = vmul.f32 %v225, %v1661
    %v1846 = vmul.f32 %v226, %v1661
    %v1847 = vmul.f32 %v227, %v1661
    %v1848 = vmul.f32 %v228, %v1661
    %v1849 = vmul.f32 %v229, %v1661
    %v1850 = vmul.f32 %v230, %v1661
    %v1851 = vmul.f32 %v231, %v1661
    %v1852 = vmul.f32 %v232, %v1661
    %v1853 = vmul.f32 %v233, %v1661
    %v1854 = vmul.f32 %v234, %v1661
    %v1855 = vmul.f32 %v235, %v1661
    %v1856 = vmul.f32 %v236, %v1661
    %v1857 = vmul.f32 %v237, %v1661
    %v1858 = vmul.f32 %v238, %v1661
    %v1859 = vmul.f32 %v239, %v1661
    %v1860 = vmul.f32 %v240, %v1661
    %v1861 = vmul.f32 %v241, %v1661
    %v1862 = vmul.f32 %v242, %v1661
    %v1863 = vmul.f32 %v243, %v1661
    %v1864 = vmul.f32 %v244, %v1661
    %v1865 = vmul.f32 %v245, %v1661
    %v1866 = vmul.f32 %v246, %v1661
    %v1867 = vmul.f32 %v247, %v1661
    %v1868 = vmul.f32 %v248, %v1661
    %v1869 = vmul.f32 %v249, %v1661
    %v1870 = vmul.f32 %v250, %v1661
    %v1871 = vmul.f32 %v251, %v1661
    %v1872 = vmul.f32 %v252, %v1661
    %v1873 = vmul.f32 %v253, %v1661
    %v1874 = vmul.f32 %v254, %v1661
    %v1875 = vmul.f32 %v255, %v1661
    %v1876 = vmul.f32 %v256, %v1661
    %v1877 = vmul.f32 %v257, %v1661
    %v1878 = vmul.f32 %v258, %v1661
    %v1879 = vmul.f32 %v259, %v1661
    %v1880 = vmul.f32 %v260, %v1661
    %v1881 = vmul.f32 %v261, %v1661
    %v1882 = vmul.f32 %v262, %v1661
    %v1883 = vmul.f32 %v263, %v1661
    %v1884 = vmul.f32 %v264, %v1661
    %v1885 = vmul.f32 %v265, %v1661
    %v1886 = vmul.f32 %v266, %v1661
    %v1887 = vmul.f32 %v267, %v1661
    %v1888 = vmul.f32 %v268, %v1661
    %v1889 = vmul.f32 %v269, %v1661
    %v1890 = vmul.f32 %v270, %v1661
    %v1891 = vmul.f32 %v271, %v1661
    %v1892 = vmul.f32 %v272, %v1661
    %v1893 = vmul.f32 %v273, %v1661
    %v1894 = vmul.f32 %v274, %v1661
    %v1895 = vmul.f32 %v275, %v1661
    %v1896 = vmul.f32 %v276, %v1661
    %v1897 = vmul.f32 %v277, %v1661
    %v1898 = vmul.f32 %v278, %v1661
    %v1899 = vmul.f32 %v279, %v1661
    %v1900 = vmul.f32 %v280, %v1661
    %v1901 = vmul.f32 %v281, %v1661
    %v1902 = vmul.f32 %v282, %v1661
    %v1903 = vmul.f32 %v283, %v1661
    %v1904 = vmul.f32 %v284, %v1661
    %v1905 = vmul.f32 %v285, %v1661
    %v1906 = vmul.f32 %v286, %v1661
    %v1907 = vmul.f32 %v287, %v1661
    %v1908 = vmul.f32 %v288, %v1661
    %v1909 = vmul.f32 %v289, %v1661
    %v1910 = vmul.f32 %v290, %v1661
    %v1911 = vmul.f32 %v291, %v1661
    %v1912 = vmul.f32 %v292, %v1661
    %v1913 = vmul.f32 %v293, %v1661
    %v1914 = vmul.f32 %v294, %v1661
    %v1915 = vmul.f32 %v295, %v1661
    %v1916 = vmul.f32 %v296, %v1661
    %v1917 = vmul.f32 %v297, %v1661
    %v1918 = vmul.f32 %v298, %v1661
    %v1919 = vmul.f32 %v299, %v1661
    %v1920 = vmul.f32 %v300, %v1661
    %v1921 = vmul.f32 %v301, %v1661
    %v1922 = vmul.f32 %v302, %v1661
    %v1923 = vmul.f32 %v303, %v1661
    %v1924 = vmul.f32 %v304, %v1661
    %v1925 = vmul.f32 %v305, %v1661
    %v1926 = vmul.f32 %v306, %v1661
    %v1927 = vmul.f32 %v307, %v1661
    %v1928 = vmul.f32 %v308, %v1661
    %v1929 = vmul.f32 %v309, %v1661
    %v1930 = vmul.f32 %v310, %v1661
    %v1931 = vmul.f32 %v311, %v1661
    %v1932 = vmul.f32 %v312, %v1661
    %v1933 = vmul.f32 %v313, %v1661
    %v1934 = vmul.f32 %v314, %v1661
    %v1935 = vmul.f32 %v315, %v1661
    %v1936 = vmul.f32 %v316, %v1661
    %v1937 = vmul.f32 %v317, %v1661
    %v1938 = vmul.f32 %v318, %v1661
    %v1939 = vmul.f32 %v319, %v1661
    %v1940 = vmul.f32 %v320, %v1661
    %v1941 = vmul.f32 %v321, %v1661
    %v1942 = vmul.f32 %v322, %v1661
    %v1943 = vmul.f32 %v323, %v1661
    %v1944 = vmul.f32 %v324, %v1661
    %v1945 = vmul.f32 %v325, %v1661
    %v1946 = vmul.f32 %v326, %v1661
    %v1947 = vmul.f32 %v327, %v1661
    %v1948 = vmul.f32 %v328, %v1661
    %v1949 = vmul.f32 %v329, %v1661
    %v1950 = vmul.f32 %v330, %v1661
    %v1951 = vmul.f32 %v331, %v1661
    %v1952 = vmul.f32 %v332, %v1661
    %v1953 = vmul.f32 %v333, %v1661
    %v1954 = vmul.f32 %v334, %v1661
    %v1955 = vmul.f32 %v335, %v1661
    %v1956 = vmul.f32 %v336, %v1661
    %v1957 = vmul.f32 %v337, %v1661
    %v1958 = vmul.f32 %v338, %v1661
    %v1959 = vmul.f32 %v339, %v1661
    %v1960 = vmul.f32 %v340, %v1661
    %v1961 = vmul.f32 %v341, %v1661
    %v1962 = vmul.f32 %v342, %v1661
    %v1963 = vmul.f32 %v343, %v1661
    %v1964 = vmul.f32 %v344, %v1661
    %v1965 = vmul.f32 %v345, %v1661
    %v1966 = vmul.f32 %v346, %v1661
    %v1967 = vmul.f32 %v347, %v1661
    %v1968 = vmul.f32 %v348, %v1661
    %v1969 = vmul.f32 %v349, %v1661
    %v1970 = vmul.f32 %v350, %v1661
    %v1971 = vmul.f32 %v351, %v1661
    %v1972 = vmul.f32 %v352, %v1661
    %v1973 = vmul.f32 %v353, %v1661
    %v1974 = vmul.f32 %v354, %v1661
    %v1975 = vmul.f32 %v355, %v1661
    %v1976 = vmul.f32 %v356, %v1661
    %v1977 = vmul.f32 %v357, %v1661
    %v1978 = vmul.f32 %v358, %v1661
    %v1979 = vmul.f32 %v359, %v1661
    %v1980 = vmul.f32 %v360, %v1661
    %v1981 = vmul.f32 %v361, %v1661
    %v1982 = vmul.f32 %v362, %v1661
    %v1983 = vmul.f32 %v363, %v1661
    %v1984 = vmul.f32 %v364, %v1661
    %v1985 = vmul.f32 %v365, %v1661
    %v1986 = vmul.f32 %v366, %v1661
    %v1987 = vmul.f32 %v367, %v1661
    %v1988 = vmul.f32 %v368, %v1661
    %v1989 = vmul.f32 %v369, %v1661
    %v1990 = vmul.f32 %v370, %v1661
    %v1991 = vmul.f32 %v371, %v1661
    %v1992 = vmul.f32 %v372, %v1661
    %v1993 = vmul.f32 %v373, %v1661
    %v1994 = vmul.f32 %v374, %v1661
    %v1995 = vmul.f32 %v375, %v1661
    %v1996 = vmul.f32 %v376, %v1661
    %v1997 = vmul.f32 %v377, %v1661
    %v1998 = vmul.f32 %v378, %v1661
    %v1999 = vmul.f32 %v379, %v1661
    %v2000 = vmul.f32 %v380, %v1661
    %v2001 = vmul.f32 %v381, %v1661
    %v2002 = vmul.f32 %v382, %v1661
    %v2003 = vmul.f32 %v383, %v1661
    %v2004 = vmul.f32 %v384, %v1661
    %v2005 = vmul.f32 %v385, %v1661
    %v2006 = vmul.f32 %v386, %v1661
    %v2007 = vmul.f32 %v387, %v1661
    %v2008 = vmul.f32 %v388, %v1661
    %v2009 = vmul.f32 %v389, %v1661
    %v2010 = vmul.f32 %v390, %v1661
    %v2011 = vmul.f32 %v391, %v1661
    %v2012 = vmul.f32 %v392, %v1661
    %v2013 = vmul.f32 %v393, %v1661
    %v2014 = vmul.f32 %v394, %v1661
    %v2015 = vmul.f32 %v395, %v1661
    %v2016 = vmul.f32 %v396, %v1661
    %v2017 = vmul.f32 %v397, %v1661
    %v2018 = vmul.f32 %v398, %v1661
    %v2019 = vmul.f32 %v399, %v1661
    %v2020 = vmul.f32 %v400, %v1661
    %v2021 = vmul.f32 %v401, %v1661
    %v2022 = vmul.f32 %v402, %v1661
    %v2023 = vmul.f32 %v403, %v1661
    %v2024 = vmul.f32 %v404, %v1661
    %v2025 = vmul.f32 %v405, %v1661
    %v2026 = vmul.f32 %v406, %v1661
    %v2027 = vmul.f32 %v407, %v1661
    %v2028 = vmul.f32 %v408, %v1661
    %v2029 = vmul.f32 %v409, %v1661
    %v2030 = vmul.f32 %v410, %v1661
    %v2031 = vmul.f32 %v411, %v1661
    %v2032 = vmul.f32 %v412, %v1661
    %v2033 = vmul.f32 %v413, %v1661
    %v2034 = vmul.f32 %v414, %v1661
    %v2035 = vmul.f32 %v415, %v1661
    %v2036 = vmul.f32 %v416, %v1661
    %v2037 = vmul.f32 %v417, %v1661
    %v2038 = vmul.f32 %v418, %v1661
    %v2039 = vmul.f32 %v419, %v1661
    %v2040 = vmul.f32 %v420, %v1661
    %v2041 = vmul.f32 %v421, %v1661
    %v2042 = vmul.f32 %v422, %v1661
    %v2043 = vmul.f32 %v423, %v1661
    %v2044 = vmul.f32 %v424, %v1661
    %v2045 = vmul.f32 %v425, %v1661
    %2046 = vmatprep.subr.mxu0 0.0
    %2047 = vmatpush1.msra.mxu0 %v1662
    %2048 = vmatprep.subr.mxu0 0.0
    %2049 = vmatpush1.msra.mxu0 %v1663
    %2050 = vmatprep.subr.mxu0 0.0
    %2051 = vmatpush1.msra.mxu0 %v1664
    %2052 = vmatprep.subr.mxu0 0.0
    %2053 = vmatpush1.msra.mxu0 %v1665
    %2054 = vmatprep.subr.mxu0 0.0
    %2055 = vmatpush1.msra.mxu0 %v1666
    %2056 = vmatprep.subr.mxu0 0.0
    %2057 = vmatpush1.msra.mxu0 %v1667
    %2058 = vmatprep.subr.mxu0 0.0
    %2059 = vmatpush1.msra.mxu0 %v1668
    %2060 = vmatprep.subr.mxu0 0.0
    %2061 = vmatpush1.msra.mxu0 %v1669
    %2062 = vmatprep.subr.mxu0 0.0
    %2063 = vmatpush1.msra.mxu0 %v1670
    %2064 = vmatprep.subr.mxu0 0.0
    %2065 = vmatpush1.msra.mxu0 %v1671
    %2066 = vmatprep.subr.mxu0 0.0
    %2067 = vmatpush1.msra.mxu0 %v1672
    %2068 = vmatprep.subr.mxu0 0.0
    %2069 = vmatpush1.msra.mxu0 %v1673
    %2070 = vmatprep.subr.mxu0 0.0
    %2071 = vmatpush1.msra.mxu0 %v1674
    %2072 = vmatprep.subr.mxu0 0.0
    %2073 = vmatpush1.msra.mxu0 %v1675
    %2074 = vmatprep.subr.mxu0 0.0
    %2075 = vmatpush1.msra.mxu0 %v1676
    %2076 = vmatprep.subr.mxu0 0.0
    %2077 = vmatpush1.msra.mxu0 %v1677
    %2078 = vmatprep.subr.mxu0 0.0
    %2079 = vmatpush1.msra.mxu0 %v1678
    %2080 = vmatprep.subr.mxu0 0.0
    %2081 = vmatpush1.msra.mxu0 %v1679
    %2082 = vmatprep.subr.mxu0 0.0
    %2083 = vmatpush1.msra.mxu0 %v1680
    %2084 = vmatprep.subr.mxu0 0.0
    %2085 = vmatpush1.msra.mxu0 %v1681
    %2086 = vmatprep.subr.mxu0 0.0
    %2087 = vmatpush1.msra.mxu0 %v1682
    %2088 = vmatprep.subr.mxu0 0.0
    %2089 = vmatpush1.msra.mxu0 %v1683
    %2090 = vmatprep.subr.mxu0 0.0
    %2091 = vmatpush1.msra.mxu0 %v1684
    %2092 = vmatprep.subr.mxu0 0.0
    %2093 = vmatpush1.msra.mxu0 %v1685
    %2094 = vmatprep.subr.mxu0 0.0
    %2095 = vmatpush1.msra.mxu0 %v1686
    %2096 = vmatprep.subr.mxu0 0.0
    %2097 = vmatpush1.msra.mxu0 %v1687
    %2098 = vmatprep.subr.mxu0 0.0
    %2099 = vmatpush1.msra.mxu0 %v1688
    %2100 = vmatprep.subr.mxu0 0.0
    %2101 = vmatpush1.msra.mxu0 %v1689
    %2102 = vmatprep.subr.mxu0 0.0
    %2103 = vmatpush1.msra.mxu0 %v1690
    %2104 = vmatprep.subr.mxu0 0.0
    %2105 = vmatpush1.msra.mxu0 %v1691
    %2106 = vmatprep.subr.mxu0 0.0
    %2107 = vmatpush1.msra.mxu0 %v1692
    %2108 = vmatprep.subr.mxu0 0.0
    %2109 = vmatpush1.msra.mxu0 %v1693
    %2110 = vmatprep.mubr.f32.mxu0 %v479
    %2111 = vmatmul.mubr.f32.gmra.mrb[0].mxu0 %v478
    %v2112 = vpop.f32.mrb[0].mxu0
    %v2113 = vadd.f32 0.0, %v2112
    %v2114 = vpop.f32.mrb[0].mxu0
    %2115 = vdwg.mxu0
    %2116 = vmatprep.subr.mxu0 0.0
    %2117 = vmatpush1.msra.mxu0 %v1694
    %2118 = vmatprep.subr.mxu0 0.0
    %2119 = vmatpush1.msra.mxu0 %v1695
    %2120 = vmatprep.subr.mxu0 0.0
    %2121 = vmatpush1.msra.mxu0 %v1696
    %2122 = vmatprep.subr.mxu0 0.0
    %2123 = vmatpush1.msra.mxu0 %v1697
    %2124 = vmatprep.subr.mxu0 0.0
    %2125 = vmatpush1.msra.mxu0 %v1698
    %2126 = vmatprep.subr.mxu0 0.0
    %2127 = vmatpush1.msra.mxu0 %v1699
    %2128 = vmatprep.subr.mxu0 0.0
    %2129 = vmatpush1.msra.mxu0 %v1700
    %2130 = vmatprep.subr.mxu0 0.0
    %2131 = vmatpush1.msra.mxu0 %v1701
    %2132 = vmatprep.subr.mxu0 0.0
    %2133 = vmatpush1.msra.mxu0 %v1702
    %2134 = vmatprep.subr.mxu0 0.0
    %2135 = vmatpush1.msra.mxu0 %v1703
    %2136 = vmatprep.subr.mxu0 0.0
    %2137 = vmatpush1.msra.mxu0 %v1704
    %2138 = vmatprep.subr.mxu0 0.0
    %2139 = vmatpush1.msra.mxu0 %v1705
    %2140 = vmatprep.subr.mxu0 0.0
    %2141 = vmatpush1.msra.mxu0 %v1706
    %2142 = vmatprep.subr.mxu0 0.0
    %2143 = vmatpush1.msra.mxu0 %v1707
    %2144 = vmatprep.subr.mxu0 0.0
    %2145 = vmatpush1.msra.mxu0 %v1708
    %2146 = vmatprep.subr.mxu0 0.0
    %2147 = vmatpush1.msra.mxu0 %v1709
    %2148 = vmatprep.subr.mxu0 0.0
    %2149 = vmatpush1.msra.mxu0 %v1710
    %2150 = vmatprep.subr.mxu0 0.0
    %2151 = vmatpush1.msra.mxu0 %v1711
    %2152 = vmatprep.subr.mxu0 0.0
    %2153 = vmatpush1.msra.mxu0 %v1712
    %2154 = vmatprep.subr.mxu0 0.0
    %2155 = vmatpush1.msra.mxu0 %v1713
    %2156 = vmatprep.subr.mxu0 0.0
    %2157 = vmatpush1.msra.mxu0 %v1714
    %2158 = vmatprep.subr.mxu0 0.0
    %2159 = vmatpush1.msra.mxu0 %v1715
    %2160 = vmatprep.subr.mxu0 0.0
    %2161 = vmatpush1.msra.mxu0 %v1716
    %2162 = vmatprep.subr.mxu0 0.0
    %2163 = vmatpush1.msra.mxu0 %v1717
    %2164 = vmatprep.subr.mxu0 0.0
    %2165 = vmatpush1.msra.mxu0 %v1718
    %2166 = vmatprep.subr.mxu0 0.0
    %2167 = vmatpush1.msra.mxu0 %v1719
    %2168 = vmatprep.subr.mxu0 0.0
    %2169 = vmatpush1.msra.mxu0 %v1720
    %2170 = vmatprep.subr.mxu0 0.0
    %2171 = vmatpush1.msra.mxu0 %v1721
    %2172 = vmatprep.subr.mxu0 0.0
    %2173 = vmatpush1.msra.mxu0 %v1722
    %2174 = vmatprep.subr.mxu0 0.0
    %2175 = vmatpush1.msra.mxu0 %v1723
    %2176 = vmatprep.subr.mxu0 0.0
    %2177 = vmatpush1.msra.mxu0 %v1724
    %2178 = vmatprep.subr.mxu0 0.0
    %2179 = vmatpush1.msra.mxu0 %v1725
    %2180 = vmatprep.mubr.f32.mxu0 %v481
    %2181 = vmatmul.mubr.f32.gmra.mrb[0].mxu0 %v480
    %v2182 = vpop.f32.mrb[0].mxu0
    %v2183 = vadd.f32 %v2113, %v2182
    %v2184 = vpop.f32.mrb[0].mxu0
    %2185 = vdwg.mxu0
    %2186 = vmatprep.subr.mxu0 0.0
    %2187 = vmatpush1.msra.mxu0 %v1726
    %2188 = vmatprep.subr.mxu0 0.0
    %2189 = vmatpush1.msra.mxu0 %v1727
    %2190 = vmatprep.subr.mxu0 0.0
    %2191 = vmatpush1.msra.mxu0 %v1728
    %2192 = vmatprep.subr.mxu0 0.0
    %2193 = vmatpush1.msra.mxu0 %v1729
    %2194 = vmatprep.subr.mxu0 0.0
    %2195 = vmatpush1.msra.mxu0 %v1730
    %2196 = vmatprep.subr.mxu0 0.0
    %2197 = vmatpush1.msra.mxu0 %v1731
    %2198 = vmatprep.subr.mxu0 0.0
    %2199 = vmatpush1.msra.mxu0 %v1732
    %2200 = vmatprep.subr.mxu0 0.0
    %2201 = vmatpush1.msra.mxu0 %v1733
    %2202 = vmatprep.subr.mxu0 0.0
    %2203 = vmatpush1.msra.mxu0 %v1734
    %2204 = vmatprep.subr.mxu0 0.0
    %2205 = vmatpush1.msra.mxu0 %v1735
    %2206 = vmatprep.subr.mxu0 0.0
    %2207 = vmatpush1.msra.mxu0 %v1736
    %2208 = vmatprep.subr.mxu0 0.0
    %2209 = vmatpush1.msra.mxu0 %v1737
    %2210 = vmatprep.subr.mxu0 0.0
    %2211 = vmatpush1.msra.mxu0 %v1738
    %2212 = vmatprep.subr.mxu0 0.0
    %2213 = vmatpush1.msra.mxu0 %v1739
    %2214 = vmatprep.subr.mxu0 0.0
    %2215 = vmatpush1.msra.mxu0 %v1740
    %2216 = vmatprep.subr.mxu0 0.0
    %2217 = vmatpush1.msra.mxu0 %v1741
    %2218 = vmatprep.subr.mxu0 0.0
    %2219 = vmatpush1.msra.mxu0 %v1742
    %2220 = vmatprep.subr.mxu0 0.0
    %2221 = vmatpush1.msra.mxu0 %v1743
    %2222 = vmatprep.subr.mxu0 0.0
    %2223 = vmatpush1.msra.mxu0 %v1744
    %2224 = vmatprep.subr.mxu0 0.0
    %2225 = vmatpush1.msra.mxu0 %v1745
    %2226 = vmatprep.subr.mxu0 0.0
    %2227 = vmatpush1.msra.mxu0 %v1746
    %2228 = vmatprep.subr.mxu0 0.0
    %2229 = vmatpush1.msra.mxu0 %v1747
    %2230 = vmatprep.subr.mxu0 0.0
    %2231 = vmatpush1.msra.mxu0 %v1748
    %2232 = vmatprep.subr.mxu0 0.0
    %2233 = vmatpush1.msra.mxu0 %v1749
    %2234 = vmatprep.subr.mxu0 0.0
    %2235 = vmatpush1.msra.mxu0 %v1750
    %2236 = vmatprep.subr.mxu0 0.0
    %2237 = vmatpush1.msra.mxu0 %v1751
    %2238 = vmatprep.subr.mxu0 0.0
    %2239 = vmatpush1.msra.mxu0 %v1752
    %2240 = vmatprep.subr.mxu0 0.0
    %2241 = vmatpush1.msra.mxu0 %v1753
    %2242 = vmatprep.subr.mxu0 0.0
    %2243 = vmatpush1.msra.mxu0 %v1754
    %2244 = vmatprep.subr.mxu0 0.0
    %2245 = vmatpush1.msra.mxu0 %v1755
    %2246 = vmatprep.subr.mxu0 0.0
    %2247 = vmatpush1.msra.mxu0 %v1756
    %2248 = vmatprep.subr.mxu0 0.0
    %2249 = vmatpush1.msra.mxu0 %v1757
    %2250 = vmatprep.mubr.f32.mxu0 %v483
    %2251 = vmatmul.mubr.f32.gmra.mrb[0].mxu0 %v482
    %v2252 = vpop.f32.mrb[0].mxu0
    %v2253 = vadd.f32 %v2183, %v2252
    %v2254 = vpop.f32.mrb[0].mxu0
    %2255 = vdwg.mxu0
    %2256 = vmatprep.subr.mxu0 0.0
    %2257 = vmatpush1.msra.mxu0 %v1758
    %2258 = vmatprep.subr.mxu0 0.0
    %2259 = vmatpush1.msra.mxu0 %v1759
    %2260 = vmatprep.subr.mxu0 0.0
    %2261 = vmatpush1.msra.mxu0 %v1760
    %2262 = vmatprep.subr.mxu0 0.0
    %2263 = vmatpush1.msra.mxu0 %v1761
    %2264 = vmatprep.subr.mxu0 0.0
    %2265 = vmatpush1.msra.mxu0 %v1762
    %2266 = vmatprep.subr.mxu0 0.0
    %2267 = vmatpush1.msra.mxu0 %v1763
    %2268 = vmatprep.subr.mxu0 0.0
    %2269 = vmatpush1.msra.mxu0 %v1764
    %2270 = vmatprep.subr.mxu0 0.0
    %2271 = vmatpush1.msra.mxu0 %v1765
    %2272 = vmatprep.subr.mxu0 0.0
    %2273 = vmatpush1.msra.mxu0 %v1766
    %2274 = vmatprep.subr.mxu0 0.0
    %2275 = vmatpush1.msra.mxu0 %v1767
    %2276 = vmatprep.subr.mxu0 0.0
    %2277 = vmatpush1.msra.mxu0 %v1768
    %2278 = vmatprep.subr.mxu0 0.0
    %2279 = vmatpush1.msra.mxu0 %v1769
    %2280 = vmatprep.subr.mxu0 0.0
    %2281 = vmatpush1.msra.mxu0 %v1770
    %2282 = vmatprep.subr.mxu0 0.0
    %2283 = vmatpush1.msra.mxu0 %v1771
    %2284 = vmatprep.subr.mxu0 0.0
    %2285 = vmatpush1.msra.mxu0 %v1772
    %2286 = vmatprep.subr.mxu0 0.0
    %2287 = vmatpush1.msra.mxu0 %v1773
    %2288 = vmatprep.subr.mxu0 0.0
    %2289 = vmatpush1.msra.mxu0 %v1774
    %2290 = vmatprep.subr.mxu0 0.0
    %2291 = vmatpush1.msra.mxu0 %v1775
    %2292 = vmatprep.subr.mxu0 0.0
    %2293 = vmatpush1.msra.mxu0 %v1776
    %2294 = vmatprep.subr.mxu0 0.0
    %2295 = vmatpush1.msra.mxu0 %v1777
    %2296 = vmatprep.subr.mxu0 0.0
    %2297 = vmatpush1.msra.mxu0 %v1778
    %2298 = vmatprep.subr.mxu0 0.0
    %2299 = vmatpush1.msra.mxu0 %v1779
    %2300 = vmatprep.subr.mxu0 0.0
    %2301 = vmatpush1.msra.mxu0 %v1780
    %2302 = vmatprep.subr.mxu0 0.0
    %2303 = vmatpush1.msra.mxu0 %v1781
    %2304 = vmatprep.subr.mxu0 0.0
    %2305 = vmatpush1.msra.mxu0 %v1782
    %2306 = vmatprep.subr.mxu0 0.0
    %2307 = vmatpush1.msra.mxu0 %v1783
    %2308 = vmatprep.subr.mxu0 0.0
    %2309 = vmatpush1.msra.mxu0 %v1784
    %2310 = vmatprep.subr.mxu0 0.0
    %2311 = vmatpush1.msra.mxu0 %v1785
    %2312 = vmatprep.subr.mxu0 0.0
    %2313 = vmatpush1.msra.mxu0 %v1786
    %2314 = vmatprep.subr.mxu0 0.0
    %2315 = vmatpush1.msra.mxu0 %v1787
    %2316 = vmatprep.subr.mxu0 0.0
    %2317 = vmatpush1.msra.mxu0 %v1788
    %2318 = vmatprep.subr.mxu0 0.0
    %2319 = vmatpush1.msra.mxu0 %v1789
    %2320 = vmatprep.mubr.f32.mxu0 %v485
    %2321 = vmatmul.mubr.f32.gmra.mrb[0].mxu0 %v484
    %v2322 = vpop.f32.mrb[0].mxu0
    %v2323 = vadd.f32 %v2253, %v2322
    %v2324 = vpop.f32.mrb[0].mxu0
    %2325 = vdwg.mxu0
    %2326 = vmatprep.subr.mxu0 0.0
    %2327 = vmatpush1.msra.mxu0 %v1790
    %2328 = vmatprep.subr.mxu0 0.0
    %2329 = vmatpush1.msra.mxu0 %v1791
    %2330 = vmatprep.subr.mxu0 0.0
    %2331 = vmatpush1.msra.mxu0 %v1792
    %2332 = vmatprep.subr.mxu0 0.0
    %2333 = vmatpush1.msra.mxu0 %v1793
    %2334 = vmatprep.subr.mxu0 0.0
    %2335 = vmatpush1.msra.mxu0 %v1794
    %2336 = vmatprep.subr.mxu0 0.0
    %2337 = vmatpush1.msra.mxu0 %v1795
    %2338 = vmatprep.subr.mxu0 0.0
    %2339 = vmatpush1.msra.mxu0 %v1796
    %2340 = vmatprep.subr.mxu0 0.0
    %2341 = vmatpush1.msra.mxu0 %v1797
    %2342 = vmatprep.subr.mxu0 0.0
    %2343 = vmatpush1.msra.mxu0 %v1798
    %2344 = vmatprep.subr.mxu0 0.0
    %2345 = vmatpush1.msra.mxu0 %v1799
    %2346 = vmatprep.subr.mxu0 0.0
    %2347 = vmatpush1.msra.mxu0 %v1800
    %2348 = vmatprep.subr.mxu0 0.0
    %2349 = vmatpush1.msra.mxu0 %v1801
    %2350 = vmatprep.subr.mxu0 0.0
    %2351 = vmatpush1.msra.mxu0 %v1802
    %2352 = vmatprep.subr.mxu0 0.0
    %2353 = vmatpush1.msra.mxu0 %v1803
    %2354 = vmatprep.subr.mxu0 0.0
    %2355 = vmatpush1.msra.mxu0 %v1804
    %2356 = vmatprep.subr.mxu0 0.0
    %2357 = vmatpush1.msra.mxu0 %v1805
    %2358 = vmatprep.subr.mxu0 0.0
    %2359 = vmatpush1.msra.mxu0 %v1806
    %2360 = vmatprep.subr.mxu0 0.0
    %2361 = vmatpush1.msra.mxu0 %v1807
    %2362 = vmatprep.subr.mxu0 0.0
    %2363 = vmatpush1.msra.mxu0 %v1808
    %2364 = vmatprep.subr.mxu0 0.0
    %2365 = vmatpush1.msra.mxu0 %v1809
    %2366 = vmatprep.subr.mxu0 0.0
    %2367 = vmatpush1.msra.mxu0 %v1810
    %2368 = vmatprep.subr.mxu0 0.0
    %2369 = vmatpush1.msra.mxu0 %v1811
    %2370 = vmatprep.subr.mxu0 0.0
    %2371 = vmatpush1.msra.mxu0 %v1812
    %2372 = vmatprep.subr.mxu0 0.0
    %2373 = vmatpush1.msra.mxu0 %v1813
    %2374 = vmatprep.subr.mxu0 0.0
    %2375 = vmatpush1.msra.mxu0 %v1814
    %2376 = vmatprep.subr.mxu0 0.0
    %2377 = vmatpush1.msra.mxu0 %v1815
    %2378 = vmatprep.subr.mxu0 0.0
    %2379 = vmatpush1.msra.mxu0 %v1816
    %2380 = vmatprep.subr.mxu0 0.0
    %2381 = vmatpush1.msra.mxu0 %v1817
    %2382 = vmatprep.subr.mxu0 0.0
    %2383 = vmatpush1.msra.mxu0 %v1818
    %2384 = vmatprep.subr.mxu0 0.0
    %2385 = vmatpush1.msra.mxu0 %v1819
    %2386 = vmatprep.subr.mxu0 0.0
    %2387 = vmatpush1.msra.mxu0 %v1820
    %2388 = vmatprep.subr.mxu0 0.0
    %2389 = vmatpush1.msra.mxu0 %v1821
    %2390 = vmatprep.mubr.f32.mxu0 %v487
    %2391 = vmatmul.mubr.f32.gmra.mrb[0].mxu0 %v486
    %v2392 = vpop.f32.mrb[0].mxu0
    %v2393 = vadd.f32 %v2323, %v2392
    %v2394 = vpop.f32.mrb[0].mxu0
    %2395 = vdwg.mxu0
    %2396 = vmatprep.subr.mxu0 0.0
    %2397 = vmatpush1.msra.mxu0 %v1822
    %2398 = vmatprep.subr.mxu0 0.0
    %2399 = vmatpush1.msra.mxu0 %v1823
    %2400 = vmatprep.subr.mxu0 0.0
    %2401 = vmatpush1.msra.mxu0 %v1824
    %2402 = vmatprep.subr.mxu0 0.0
    %2403 = vmatpush1.msra.mxu0 %v1825
    %2404 = vmatprep.subr.mxu0 0.0
    %2405 = vmatpush1.msra.mxu0 %v1826
    %2406 = vmatprep.subr.mxu0 0.0
    %2407 = vmatpush1.msra.mxu0 %v1827
    %2408 = vmatprep.subr.mxu0 0.0
    %2409 = vmatpush1.msra.mxu0 %v1828
    %2410 = vmatprep.subr.mxu0 0.0
    %2411 = vmatpush1.msra.mxu0 %v1829
    %2412 = vmatprep.subr.mxu0 0.0
    %2413 = vmatpush1.msra.mxu0 %v1830
    %2414 = vmatprep.subr.mxu0 0.0
    %2415 = vmatpush1.msra.mxu0 %v1831
    %2416 = vmatprep.subr.mxu0 0.0
    %2417 = vmatpush1.msra.mxu0 %v1832
    %2418 = vmatprep.subr.mxu0 0.0
    %2419 = vmatpush1.msra.mxu0 %v1833
    %2420 = vmatprep.subr.mxu0 0.0
    %2421 = vmatpush1.msra.mxu0 %v1834
    %2422 = vmatprep.subr.mxu0 0.0
    %2423 = vmatpush1.msra.mxu0 %v1835
    %2424 = vmatprep.subr.mxu0 0.0
    %2425 = vmatpush1.msra.mxu0 %v1836
    %2426 = vmatprep.subr.mxu0 0.0
    %2427 = vmatpush1.msra.mxu0 %v1837
    %2428 = vmatprep.subr.mxu0 0.0
    %2429 = vmatpush1.msra.mxu0 %v1838
    %2430 = vmatprep.subr.mxu0 0.0
    %2431 = vmatpush1.msra.mxu0 %v1839
    %2432 = vmatprep.subr.mxu0 0.0
    %2433 = vmatpush1.msra.mxu0 %v1840
    %2434 = vmatprep.subr.mxu0 0.0
    %2435 = vmatpush1.msra.mxu0 %v1841
    %2436 = vmatprep.subr.mxu0 0.0
    %2437 = vmatpush1.msra.mxu0 %v1842
    %2438 = vmatprep.subr.mxu0 0.0
    %2439 = vmatpush1.msra.mxu0 %v1843
    %2440 = vmatprep.subr.mxu0 0.0
    %2441 = vmatpush1.msra.mxu0 %v1844
    %2442 = vmatprep.subr.mxu0 0.0
    %2443 = vmatpush1.msra.mxu0 %v1845
    %2444 = vmatprep.subr.mxu0 0.0
    %2445 = vmatpush1.msra.mxu0 %v1846
    %2446 = vmatprep.subr.mxu0 0.0
    %2447 = vmatpush1.msra.mxu0 %v1847
    %2448 = vmatprep.subr.mxu0 0.0
    %2449 = vmatpush1.msra.mxu0 %v1848
    %2450 = vmatprep.subr.mxu0 0.0
    %2451 = vmatpush1.msra.mxu0 %v1849
    %2452 = vmatprep.subr.mxu0 0.0
    %2453 = vmatpush1.msra.mxu0 %v1850
    %2454 = vmatprep.subr.mxu0 0.0
    %2455 = vmatpush1.msra.mxu0 %v1851
    %2456 = vmatprep.subr.mxu0 0.0
    %2457 = vmatpush1.msra.mxu0 %v1852
    %2458 = vmatprep.subr.mxu0 0.0
    %2459 = vmatpush1.msra.mxu0 %v1853
    %2460 = vmatprep.mubr.f32.mxu0 %v489
    %2461 = vmatmul.mubr.f32.gmra.mrb[0].mxu0 %v488
    %v2462 = vpop.f32.mrb[0].mxu0
    %v2463 = vadd.f32 %v2393, %v2462
    %v2464 = vpop.f32.mrb[0].mxu0
    %2465 = vdwg.mxu0
    %2466 = vmatprep.subr.mxu0 0.0
    %2467 = vmatpush1.msra.mxu0 %v1854
    %2468 = vmatprep.subr.mxu0 0.0
    %2469 = vmatpush1.msra.mxu0 %v1855
    %2470 = vmatprep.subr.mxu0 0.0
    %2471 = vmatpush1.msra.mxu0 %v1856
    %2472 = vmatprep.subr.mxu0 0.0
    %2473 = vmatpush1.msra.mxu0 %v1857
    %2474 = vmatprep.subr.mxu0 0.0
    %2475 = vmatpush1.msra.mxu0 %v1858
    %2476 = vmatprep.subr.mxu0 0.0
    %2477 = vmatpush1.msra.mxu0 %v1859
    %2478 = vmatprep.subr.mxu0 0.0
    %2479 = vmatpush1.msra.mxu0 %v1860
    %2480 = vmatprep.subr.mxu0 0.0
    %2481 = vmatpush1.msra.mxu0 %v1861
    %2482 = vmatprep.subr.mxu0 0.0
    %2483 = vmatpush1.msra.mxu0 %v1862
    %2484 = vmatprep.subr.mxu0 0.0
    %2485 = vmatpush1.msra.mxu0 %v1863
    %2486 = vmatprep.subr.mxu0 0.0
    %2487 = vmatpush1.msra.mxu0 %v1864
    %2488 = vmatprep.subr.mxu0 0.0
    %2489 = vmatpush1.msra.mxu0 %v1865
    %2490 = vmatprep.subr.mxu0 0.0
    %2491 = vmatpush1.msra.mxu0 %v1866
    %2492 = vmatprep.subr.mxu0 0.0
    %2493 = vmatpush1.msra.mxu0 %v1867
    %2494 = vmatprep.subr.mxu0 0.0
    %2495 = vmatpush1.msra.mxu0 %v1868
    %2496 = vmatprep.subr.mxu0 0.0
    %2497 = vmatpush1.msra.mxu0 %v1869
    %2498 = vmatprep.subr.mxu0 0.0
    %2499 = vmatpush1.msra.mxu0 %v1870
    %2500 = vmatprep.subr.mxu0 0.0
    %2501 = vmatpush1.msra.mxu0 %v1871
    %2502 = vmatprep.subr.mxu0 0.0
    %2503 = vmatpush1.msra.mxu0 %v1872
    %2504 = vmatprep.subr.mxu0 0.0
    %2505 = vmatpush1.msra.mxu0 %v1873
    %2506 = vmatprep.subr.mxu0 0.0
    %2507 = vmatpush1.msra.mxu0 %v1874
    %2508 = vmatprep.subr.mxu0 0.0
    %2509 = vmatpush1.msra.mxu0 %v1875
    %2510 = vmatprep.subr.mxu0 0.0
    %2511 = vmatpush1.msra.mxu0 %v1876
    %2512 = vmatprep.subr.mxu0 0.0
    %2513 = vmatpush1.msra.mxu0 %v1877
    %2514 = vmatprep.subr.mxu0 0.0
    %2515 = vmatpush1.msra.mxu0 %v1878
    %2516 = vmatprep.subr.mxu0 0.0
    %2517 = vmatpush1.msra.mxu0 %v1879
    %2518 = vmatprep.subr.mxu0 0.0
    %2519 = vmatpush1.msra.mxu0 %v1880
    %2520 = vmatprep.subr.mxu0 0.0
    %2521 = vmatpush1.msra.mxu0 %v1881
    %2522 = vmatprep.subr.mxu0 0.0
    %2523 = vmatpush1.msra.mxu0 %v1882
    %2524 = vmatprep.subr.mxu0 0.0
    %2525 = vmatpush1.msra.mxu0 %v1883
    %2526 = vmatprep.subr.mxu0 0.0
    %2527 = vmatpush1.msra.mxu0 %v1884
    %2528 = vmatprep.subr.mxu0 0.0
    %2529 = vmatpush1.msra.mxu0 %v1885
    %2530 = vmatprep.mubr.f32.mxu0 %v491
    %2531 = vmatmul.mubr.f32.gmra.mrb[0].mxu0 %v490
    %v2532 = vpop.f32.mrb[0].mxu0
    %v2533 = vadd.f32 %v2463, %v2532
    %v2534 = vpop.f32.mrb[0].mxu0
    %2535 = vdwg.mxu0
    %2536 = vmatprep.subr.mxu0 0.0
    %2537 = vmatpush1.msra.mxu0 %v1886
    %2538 = vmatprep.subr.mxu0 0.0
    %2539 = vmatpush1.msra.mxu0 %v1887
    %2540 = vmatprep.subr.mxu0 0.0
    %2541 = vmatpush1.msra.mxu0 %v1888
    %2542 = vmatprep.subr.mxu0 0.0
    %2543 = vmatpush1.msra.mxu0 %v1889
    %2544 = vmatprep.subr.mxu0 0.0
    %2545 = vmatpush1.msra.mxu0 %v1890
    %2546 = vmatprep.subr.mxu0 0.0
    %2547 = vmatpush1.msra.mxu0 %v1891
    %2548 = vmatprep.subr.mxu0 0.0
    %2549 = vmatpush1.msra.mxu0 %v1892
    %2550 = vmatprep.subr.mxu0 0.0
    %2551 = vmatpush1.msra.mxu0 %v1893
    %2552 = vmatprep.subr.mxu0 0.0
    %2553 = vmatpush1.msra.mxu0 %v1894
    %2554 = vmatprep.subr.mxu0 0.0
    %2555 = vmatpush1.msra.mxu0 %v1895
    %2556 = vmatprep.subr.mxu0 0.0
    %2557 = vmatpush1.msra.mxu0 %v1896
    %2558 = vmatprep.subr.mxu0 0.0
    %2559 = vmatpush1.msra.mxu0 %v1897
    %2560 = vmatprep.subr.mxu0 0.0
    %2561 = vmatpush1.msra.mxu0 %v1898
    %2562 = vmatprep.subr.mxu0 0.0
    %2563 = vmatpush1.msra.mxu0 %v1899
    %2564 = vmatprep.subr.mxu0 0.0
    %2565 = vmatpush1.msra.mxu0 %v1900
    %2566 = vmatprep.subr.mxu0 0.0
    %2567 = vmatpush1.msra.mxu0 %v1901
    %2568 = vmatprep.subr.mxu0 0.0
    %2569 = vmatpush1.msra.mxu0 %v1902
    %2570 = vmatprep.subr.mxu0 0.0
    %2571 = vmatpush1.msra.mxu0 %v1903
    %2572 = vmatprep.subr.mxu0 0.0
    %2573 = vmatpush1.msra.mxu0 %v1904
    %2574 = vmatprep.subr.mxu0 0.0
    %2575 = vmatpush1.msra.mxu0 %v1905
    %2576 = vmatprep.subr.mxu0 0.0
    %2577 = vmatpush1.msra.mxu0 %v1906
    %2578 = vmatprep.subr.mxu0 0.0
    %2579 = vmatpush1.msra.mxu0 %v1907
    %2580 = vmatprep.subr.mxu0 0.0
    %2581 = vmatpush1.msra.mxu0 %v1908
    %2582 = vmatprep.subr.mxu0 0.0
    %2583 = vmatpush1.msra.mxu0 %v1909
    %2584 = vmatprep.subr.mxu0 0.0
    %2585 = vmatpush1.msra.mxu0 %v1910
    %2586 = vmatprep.subr.mxu0 0.0
    %2587 = vmatpush1.msra.mxu0 %v1911
    %2588 = vmatprep.subr.mxu0 0.0
    %2589 = vmatpush1.msra.mxu0 %v1912
    %2590 = vmatprep.subr.mxu0 0.0
    %2591 = vmatpush1.msra.mxu0 %v1913
    %2592 = vmatprep.subr.mxu0 0.0
    %2593 = vmatpush1.msra.mxu0 %v1914
    %2594 = vmatprep.subr.mxu0 0.0
    %2595 = vmatpush1.msra.mxu0 %v1915
    %2596 = vmatprep.subr.mxu0 0.0
    %2597 = vmatpush1.msra.mxu0 %v1916
    %2598 = vmatprep.subr.mxu0 0.0
    %2599 = vmatpush1.msra.mxu0 %v1917
    %2600 = vmatprep.mubr.f32.mxu0 %v493
    %2601 = vmatmul.mubr.f32.gmra.mrb[0].mxu0 %v492
    %v2602 = vpop.f32.mrb[0].mxu0
    %v2603 = vadd.f32 %v2533, %v2602
    %v2604 = vpop.f32.mrb[0].mxu0
    %2605 = vdwg.mxu0
    %2606 = vmatprep.subr.mxu0 0.0
    %2607 = vmatpush1.msra.mxu0 %v1918
    %2608 = vmatprep.subr.mxu0 0.0
    %2609 = vmatpush1.msra.mxu0 %v1919
    %2610 = vmatprep.subr.mxu0 0.0
    %2611 = vmatpush1.msra.mxu0 %v1920
    %2612 = vmatprep.subr.mxu0 0.0
    %2613 = vmatpush1.msra.mxu0 %v1921
    %2614 = vmatprep.subr.mxu0 0.0
    %2615 = vmatpush1.msra.mxu0 %v1922
    %2616 = vmatprep.subr.mxu0 0.0
    %2617 = vmatpush1.msra.mxu0 %v1923
    %2618 = vmatprep.subr.mxu0 0.0
    %2619 = vmatpush1.msra.mxu0 %v1924
    %2620 = vmatprep.subr.mxu0 0.0
    %2621 = vmatpush1.msra.mxu0 %v1925
    %2622 = vmatprep.subr.mxu0 0.0
    %2623 = vmatpush1.msra.mxu0 %v1926
    %2624 = vmatprep.subr.mxu0 0.0
    %2625 = vmatpush1.msra.mxu0 %v1927
    %2626 = vmatprep.subr.mxu0 0.0
    %2627 = vmatpush1.msra.mxu0 %v1928
    %2628 = vmatprep.subr.mxu0 0.0
    %2629 = vmatpush1.msra.mxu0 %v1929
    %2630 = vmatprep.subr.mxu0 0.0
    %2631 = vmatpush1.msra.mxu0 %v1930
    %2632 = vmatprep.subr.mxu0 0.0
    %2633 = vmatpush1.msra.mxu0 %v1931
    %2634 = vmatprep.subr.mxu0 0.0
    %2635 = vmatpush1.msra.mxu0 %v1932
    %2636 = vmatprep.subr.mxu0 0.0
    %2637 = vmatpush1.msra.mxu0 %v1933
    %2638 = vmatprep.subr.mxu0 0.0
    %2639 = vmatpush1.msra.mxu0 %v1934
    %2640 = vmatprep.subr.mxu0 0.0
    %2641 = vmatpush1.msra.mxu0 %v1935
    %2642 = vmatprep.subr.mxu0 0.0
    %2643 = vmatpush1.msra.mxu0 %v1936
    %2644 = vmatprep.subr.mxu0 0.0
    %2645 = vmatpush1.msra.mxu0 %v1937
    %2646 = vmatprep.subr.mxu0 0.0
    %2647 = vmatpush1.msra.mxu0 %v1938
    %2648 = vmatprep.subr.mxu0 0.0
    %2649 = vmatpush1.msra.mxu0 %v1939
    %2650 = vmatprep.subr.mxu0 0.0
    %2651 = vmatpush1.msra.mxu0 %v1940
    %2652 = vmatprep.subr.mxu0 0.0
    %2653 = vmatpush1.msra.mxu0 %v1941
    %2654 = vmatprep.subr.mxu0 0.0
    %2655 = vmatpush1.msra.mxu0 %v1942
    %2656 = vmatprep.subr.mxu0 0.0
    %2657 = vmatpush1.msra.mxu0 %v1943
    %2658 = vmatprep.subr.mxu0 0.0
    %2659 = vmatpush1.msra.mxu0 %v1944
    %2660 = vmatprep.subr.mxu0 0.0
    %2661 = vmatpush1.msra.mxu0 %v1945
    %2662 = vmatprep.subr.mxu0 0.0
    %2663 = vmatpush1.msra.mxu0 %v1946
    %2664 = vmatprep.subr.mxu0 0.0
    %2665 = vmatpush1.msra.mxu0 %v1947
    %2666 = vmatprep.subr.mxu0 0.0
    %2667 = vmatpush1.msra.mxu0 %v1948
    %2668 = vmatprep.subr.mxu0 0.0
    %2669 = vmatpush1.msra.mxu0 %v1949
    %2670 = vmatprep.mubr.f32.mxu0 %v495
    %2671 = vmatmul.mubr.f32.gmra.mrb[0].mxu0 %v494
    %v2672 = vpop.f32.mrb[0].mxu0
    %v2673 = vadd.f32 %v2603, %v2672
    %v2674 = vpop.f32.mrb[0].mxu0
    %2675 = vdwg.mxu0
    %2676 = vmatprep.subr.mxu0 0.0
    %2677 = vmatpush1.msra.mxu0 %v1950
    %2678 = vmatprep.subr.mxu0 0.0
    %2679 = vmatpush1.msra.mxu0 %v1951
    %2680 = vmatprep.subr.mxu0 0.0
    %2681 = vmatpush1.msra.mxu0 %v1952
    %2682 = vmatprep.subr.mxu0 0.0
    %2683 = vmatpush1.msra.mxu0 %v1953
    %2684 = vmatprep.subr.mxu0 0.0
    %2685 = vmatpush1.msra.mxu0 %v1954
    %2686 = vmatprep.subr.mxu0 0.0
    %2687 = vmatpush1.msra.mxu0 %v1955
    %2688 = vmatprep.subr.mxu0 0.0
    %2689 = vmatpush1.msra.mxu0 %v1956
    %2690 = vmatprep.subr.mxu0 0.0
    %2691 = vmatpush1.msra.mxu0 %v1957
    %2692 = vmatprep.subr.mxu0 0.0
    %2693 = vmatpush1.msra.mxu0 %v1958
    %2694 = vmatprep.subr.mxu0 0.0
    %2695 = vmatpush1.msra.mxu0 %v1959
    %2696 = vmatprep.subr.mxu0 0.0
    %2697 = vmatpush1.msra.mxu0 %v1960
    %2698 = vmatprep.subr.mxu0 0.0
    %2699 = vmatpush1.msra.mxu0 %v1961
    %2700 = vmatprep.subr.mxu0 0.0
    %2701 = vmatpush1.msra.mxu0 %v1962
    %2702 = vmatprep.subr.mxu0 0.0
    %2703 = vmatpush1.msra.mxu0 %v1963
    %2704 = vmatprep.subr.mxu0 0.0
    %2705 = vmatpush1.msra.mxu0 %v1964
    %2706 = vmatprep.subr.mxu0 0.0
    %2707 = vmatpush1.msra.mxu0 %v1965
    %2708 = vmatprep.subr.mxu0 0.0
    %2709 = vmatpush1.msra.mxu0 %v1966
    %2710 = vmatprep.subr.mxu0 0.0
    %2711 = vmatpush1.msra.mxu0 %v1967
    %2712 = vmatprep.subr.mxu0 0.0
    %2713 = vmatpush1.msra.mxu0 %v1968
    %2714 = vmatprep.subr.mxu0 0.0
    %2715 = vmatpush1.msra.mxu0 %v1969
    %2716 = vmatprep.subr.mxu0 0.0
    %2717 = vmatpush1.msra.mxu0 %v1970
    %2718 = vmatprep.subr.mxu0 0.0
    %2719 = vmatpush1.msra.mxu0 %v1971
    %2720 = vmatprep.subr.mxu0 0.0
    %2721 = vmatpush1.msra.mxu0 %v1972
    %2722 = vmatprep.subr.mxu0 0.0
    %2723 = vmatpush1.msra.mxu0 %v1973
    %2724 = vmatprep.subr.mxu0 0.0
    %2725 = vmatpush1.msra.mxu0 %v1974
    %2726 = vmatprep.subr.mxu0 0.0
    %2727 = vmatpush1.msra.mxu0 %v1975
    %2728 = vmatprep.subr.mxu0 0.0
    %2729 = vmatpush1.msra.mxu0 %v1976
    %2730 = vmatprep.subr.mxu0 0.0
    %2731 = vmatpush1.msra.mxu0 %v1977
    %2732 = vmatprep.subr.mxu0 0.0
    %2733 = vmatpush1.msra.mxu0 %v1978
    %2734 = vmatprep.subr.mxu0 0.0
    %2735 = vmatpush1.msra.mxu0 %v1979
    %2736 = vmatprep.subr.mxu0 0.0
    %2737 = vmatpush1.msra.mxu0 %v1980
    %2738 = vmatprep.subr.mxu0 0.0
    %2739 = vmatpush1.msra.mxu0 %v1981
    %2740 = vmatprep.mubr.f32.mxu0 %v497
    %2741 = vmatmul.mubr.f32.gmra.mrb[0].mxu0 %v496
    %v2742 = vpop.f32.mrb[0].mxu0
    %v2743 = vadd.f32 %v2673, %v2742
    %v2744 = vpop.f32.mrb[0].mxu0
    %2745 = vdwg.mxu0
    %2746 = vmatprep.subr.mxu0 0.0
    %2747 = vmatpush1.msra.mxu0 %v1982
    %2748 = vmatprep.subr.mxu0 0.0
    %2749 = vmatpush1.msra.mxu0 %v1983
    %2750 = vmatprep.subr.mxu0 0.0
    %2751 = vmatpush1.msra.mxu0 %v1984
    %2752 = vmatprep.subr.mxu0 0.0
    %2753 = vmatpush1.msra.mxu0 %v1985
    %2754 = vmatprep.subr.mxu0 0.0
    %2755 = vmatpush1.msra.mxu0 %v1986
    %2756 = vmatprep.subr.mxu0 0.0
    %2757 = vmatpush1.msra.mxu0 %v1987
    %2758 = vmatprep.subr.mxu0 0.0
    %2759 = vmatpush1.msra.mxu0 %v1988
    %2760 = vmatprep.subr.mxu0 0.0
    %2761 = vmatpush1.msra.mxu0 %v1989
    %2762 = vmatprep.subr.mxu0 0.0
    %2763 = vmatpush1.msra.mxu0 %v1990
    %2764 = vmatprep.subr.mxu0 0.0
    %2765 = vmatpush1.msra.mxu0 %v1991
    %2766 = vmatprep.subr.mxu0 0.0
    %2767 = vmatpush1.msra.mxu0 %v1992
    %2768 = vmatprep.subr.mxu0 0.0
    %2769 = vmatpush1.msra.mxu0 %v1993
    %2770 = vmatprep.subr.mxu0 0.0
    %2771 = vmatpush1.msra.mxu0 %v1994
    %2772 = vmatprep.subr.mxu0 0.0
    %2773 = vmatpush1.msra.mxu0 %v1995
    %2774 = vmatprep.subr.mxu0 0.0
    %2775 = vmatpush1.msra.mxu0 %v1996
    %2776 = vmatprep.subr.mxu0 0.0
    %2777 = vmatpush1.msra.mxu0 %v1997
    %2778 = vmatprep.subr.mxu0 0.0
    %2779 = vmatpush1.msra.mxu0 %v1998
    %2780 = vmatprep.subr.mxu0 0.0
    %2781 = vmatpush1.msra.mxu0 %v1999
    %2782 = vmatprep.subr.mxu0 0.0
    %2783 = vmatpush1.msra.mxu0 %v2000
    %2784 = vmatprep.subr.mxu0 0.0
    %2785 = vmatpush1.msra.mxu0 %v2001
    %2786 = vmatprep.subr.mxu0 0.0
    %2787 = vmatpush1.msra.mxu0 %v2002
    %2788 = vmatprep.subr.mxu0 0.0
    %2789 = vmatpush1.msra.mxu0 %v2003
    %2790 = vmatprep.subr.mxu0 0.0
    %2791 = vmatpush1.msra.mxu0 %v2004
    %2792 = vmatprep.subr.mxu0 0.0
    %2793 = vmatpush1.msra.mxu0 %v2005
    %2794 = vmatprep.subr.mxu0 0.0
    %2795 = vmatpush1.msra.mxu0 %v2006
    %2796 = vmatprep.subr.mxu0 0.0
    %2797 = vmatpush1.msra.mxu0 %v2007
    %2798 = vmatprep.subr.mxu0 0.0
    %2799 = vmatpush1.msra.mxu0 %v2008
    %2800 = vmatprep.subr.mxu0 0.0
    %2801 = vmatpush1.msra.mxu0 %v2009
    %2802 = vmatprep.subr.mxu0 0.0
    %2803 = vmatpush1.msra.mxu0 %v2010
    %2804 = vmatprep.subr.mxu0 0.0
    %2805 = vmatpush1.msra.mxu0 %v2011
    %2806 = vmatprep.subr.mxu0 0.0
    %2807 = vmatpush1.msra.mxu0 %v2012
    %2808 = vmatprep.subr.mxu0 0.0
    %2809 = vmatpush1.msra.mxu0 %v2013
    %2810 = vmatprep.mubr.f32.mxu0 %v499
    %2811 = vmatmul.mubr.f32.gmra.mrb[0].mxu0 %v498
    %v2812 = vpop.f32.mrb[0].mxu0
    %v2813 = vadd.f32 %v2743, %v2812
    %v2814 = vpop.f32.mrb[0].mxu0
    %2815 = vdwg.mxu0
    %2816 = vmatprep.subr.mxu0 0.0
    %2817 = vmatpush1.msra.mxu0 %v2014
    %2818 = vmatprep.subr.mxu0 0.0
    %2819 = vmatpush1.msra.mxu0 %v2015
    %2820 = vmatprep.subr.mxu0 0.0
    %2821 = vmatpush1.msra.mxu0 %v2016
    %2822 = vmatprep.subr.mxu0 0.0
    %2823 = vmatpush1.msra.mxu0 %v2017
    %2824 = vmatprep.subr.mxu0 0.0
    %2825 = vmatpush1.msra.mxu0 %v2018
    %2826 = vmatprep.subr.mxu0 0.0
    %2827 = vmatpush1.msra.mxu0 %v2019
    %2828 = vmatprep.subr.mxu0 0.0
    %2829 = vmatpush1.msra.mxu0 %v2020
    %2830 = vmatprep.subr.mxu0 0.0
    %2831 = vmatpush1.msra.mxu0 %v2021
    %2832 = vmatprep.subr.mxu0 0.0
    %2833 = vmatpush1.msra.mxu0 %v2022
    %2834 = vmatprep.subr.mxu0 0.0
    %2835 = vmatpush1.msra.mxu0 %v2023
    %2836 = vmatprep.subr.mxu0 0.0
    %2837 = vmatpush1.msra.mxu0 %v2024
    %2838 = vmatprep.subr.mxu0 0.0
    %2839 = vmatpush1.msra.mxu0 %v2025
    %2840 = vmatprep.subr.mxu0 0.0
    %2841 = vmatpush1.msra.mxu0 %v2026
    %2842 = vmatprep.subr.mxu0 0.0
    %2843 = vmatpush1.msra.mxu0 %v2027
    %2844 = vmatprep.subr.mxu0 0.0
    %2845 = vmatpush1.msra.mxu0 %v2028
    %2846 = vmatprep.subr.mxu0 0.0
    %2847 = vmatpush1.msra.mxu0 %v2029
    %2848 = vmatprep.subr.mxu0 0.0
    %2849 = vmatpush1.msra.mxu0 %v2030
    %2850 = vmatprep.subr.mxu0 0.0
    %2851 = vmatpush1.msra.mxu0 %v2031
    %2852 = vmatprep.subr.mxu0 0.0
    %2853 = vmatpush1.msra.mxu0 %v2032
    %2854 = vmatprep.subr.mxu0 0.0
    %2855 = vmatpush1.msra.mxu0 %v2033
    %2856 = vmatprep.subr.mxu0 0.0
    %2857 = vmatpush1.msra.mxu0 %v2034
    %2858 = vmatprep.subr.mxu0 0.0
    %2859 = vmatpush1.msra.mxu0 %v2035
    %2860 = vmatprep.subr.mxu0 0.0
    %2861 = vmatpush1.msra.mxu0 %v2036
    %2862 = vmatprep.subr.mxu0 0.0
    %2863 = vmatpush1.msra.mxu0 %v2037
    %2864 = vmatprep.subr.mxu0 0.0
    %2865 = vmatpush1.msra.mxu0 %v2038
    %2866 = vmatprep.subr.mxu0 0.0
    %2867 = vmatpush1.msra.mxu0 %v2039
    %2868 = vmatprep.subr.mxu0 0.0
    %2869 = vmatpush1.msra.mxu0 %v2040
    %2870 = vmatprep.subr.mxu0 0.0
    %2871 = vmatpush1.msra.mxu0 %v2041
    %2872 = vmatprep.subr.mxu0 0.0
    %2873 = vmatpush1.msra.mxu0 %v2042
    %2874 = vmatprep.subr.mxu0 0.0
    %2875 = vmatpush1.msra.mxu0 %v2043
    %2876 = vmatprep.subr.mxu0 0.0
    %2877 = vmatpush1.msra.mxu0 %v2044
    %2878 = vmatprep.subr.mxu0 0.0
    %2879 = vmatpush1.msra.mxu0 %v2045
    %2880 = vmatprep.mubr.f32.mxu0 %v501
    %2881 = vmatmul.mubr.f32.gmra.mrb[0].mxu0 %v500
    %v2882 = vpop.f32.mrb[0].mxu0
    %v2883 = vadd.f32 %v2813, %v2882
    %v2884 = vpop.f32.mrb[0].mxu0
    %2885 = vdwg.mxu0
    %v2886 = vlaneseq
    %v2887 = vand.u32 %v2886, 127
    %2888 = vset.pattern.permute.xlu0 0
    %2889 = vperm.xlu0 %2888, %v426
    %v2890 = vpop.permute.xlu0 %2889
    %vm2891 = vcmp.eq.s32.totalorder %v2887, %v2890
    %v2892 = vsel %vm2891, %v2883, 0.0
    %v2893 = vsel %vm886, %v2892, 0.0
    %2894 = vadd.xlane.f32.xlu0 %v2893
    %v2895 = vpop.xlane.xlu0 %2894
    %v2896 = vmul.f32 %v2895, %v2895
    %v2897 = vsub.f32 1.0, %v2896
    %v2898 = vmax.f32 %v2897, 0.0
    %v2899 = vmin.f32 %v2898, 1.0
    %v2900 = vrsqrt.pop %v2899
    %v2901 = vmul.f32 %v2899, %v2900
    %vm2902 = vcmp.eq.f32.partialorder %v2899, inf
    %v2903 = vsel %vm2902, %v2899, %v2901
    %vm2904 = vcmp.eq.f32.partialorder %v2899, 0.0
    %v2905 = vand.u32 %v2899, 2147483648
    %v2906 = vsel %vm2904, %v2905, %v2903
    %v2907 = vmul.f32 %v2895, 0.9800666
    %v2908 = vmul.f32 %v2906, 0.19866933
    %v2909 = vsub.f32 %v2907, %v2908
    %v2910 = vsub.f32 %v2895, -0.9800666
    %vm2911 = vcmp.gt.f32.partialorder %v2910, 0.0
    %v2912 = vsub.f32 %v2895, 0.039733864
    %v2913 = vsel %vm2911, %v2909, %v2912
    %v2914 = vsub.f32 %v2913, %v2895
    %v2915 = vsel %vm2891, %v2914, 0.0
    %v2916 = vadd.f32 %v2883, %v2915
    %v2917 = vmul.f32 %v2916, 30.0
    %v2918 = vsel %vm886, %v2917, -inf
    %2919 = vmax.xlane.f32.xlu0 %v2918
    %v2920 = vpop.xlane.xlu0 %2919
    %v2921 = vsub.f32 %v2917, %v2920
    %v2922 = vmul.f32 %v2921, 1.442695
    %v2923 = vpow.pop %v2922
    %v2924 = vsel %vm886, %v2923, 0.0
    %2925 = vadd.xlane.f32.xlu0 %v2924
    %v2926 = vpop.xlane.xlu0 %2925
    %v2927 = vlog2.pop %v2926
    %v2928 = vmul.f32 %v2927, 0.6931472
    %v2929 = vadd.f32 %v2920, %v2928
    %v2930 = vmul.f32 %v2913, 30.0
    %v2931 = vsub.f32 %v2929, %v2930
    %vm2932 = vcmask 7168
    %v2933 = vsel %vm2932, %v2931, 0.0
    %2934 = vadd.xlane.f32.xlu0 %v2933
    %v2935 = vpop.xlane.xlu0 %2934
    %v2936 = vrot.slane %v2935, 4
    %v2937 = vadd.f32 %v2935, %v2936
    %v2938 = vrot.slane %v2937, 2
    %v2939 = vadd.f32 %v2937, %v2938
    %v2940 = vrot.slane %v2939, 1
    %v2941 = vadd.f32 %v2939, %v2940
    %s2942 = vtos %v2941
    %s2943 = smul.f32 %s2942, 0.125
    %s2944 = scalar_lea.smem [#allocation2], 0
    %2945 = sst [smem:[%s2944]] %s2943
    %vm2946 = vcmp.eq.f32.partialorder %v2917, %v2920
    %v2947 = vsel %vm2946, %v2887, 16
    %v2948 = vsel %vm886, %v2947, 2147483647
    %v2949 = vand.u32 %v2948, 65535
    %v2950 = vshra.s32 %v2948, 16
    %v2951 = vcvt.s32.f32 %v2949
    %v2952 = vcvt.s32.f32 %v2950
    %2953 = vmin.xlane.f32.xlu0 %v2952
    %v2954 = vpop.xlane.xlu0 %2953
    %vm2955 = vcmp.eq.f32.partialorder %v2952, %v2954
    %v2956 = vsel %vm2955, %v2951, inf
    %2957 = vmin.xlane.f32.xlu0 %v2956
    %v2958 = vpop.xlane.xlu0 %2957
    %v2959 = vcvt.f32.s32 %v2958
    %v2960 = vcvt.f32.s32 %v2954
    %v2961 = vshll.u32 %v2960, 16
    %v2962 = vadd.s32 %v2961, %v2959
    %vm2963 = vcmp.eq.s32.totalorder %v2962, %v426
    %v2964 = vsel %vm2963, 1, 0
    %v2965 = vcvt.s32.f32 %v2964
    %v2966 = vsel %vm2932, %v2965, 0.0
    %2967 = vadd.xlane.f32.xlu0 %v2966
    %v2968 = vpop.xlane.xlu0 %2967
    %v2969 = vrot.slane %v2968, 4
    %v2970 = vadd.f32 %v2968, %v2969
    %v2971 = vrot.slane %v2970, 2
    %v2972 = vadd.f32 %v2970, %v2971
    %v2973 = vrot.slane %v2972, 1
    %v2974 = vadd.f32 %v2972, %v2973
    %s2975 = vtos %v2974
    %s2976 = smul.f32 %s2975, 12.5
    %s2977 = scalar_lea.smem [#allocation4], 0
    %2978 = sst [smem:[%s2977]] %s2976
    // Predicated region
    $region14: #{tpu_custom_call.1} parent=1 // pred_check
      _
    $region15: #{tpu_custom_call.1} parent=1 // pred_check_branch
      %2980 = sbr.rel (0) target = $region17
    $region16: #{tpu_custom_call.1} parent=1 // pred_region
      %s2982 = ssub.s32 16, 16
      %2983 = vsyncadd [#allocation3], %s2982
      %2986 = dma.smem_to_hbm [#allocation2], 16, %s3, [#allocation3]
    $region17: #{tpu_custom_call.1} parent=1 // pred_fallthru
      _
    // Predicated region
    $region18: #{tpu_custom_call.1} parent=1 // pred_check
      _
    $region19: #{tpu_custom_call.1} parent=1 // pred_check_branch
      %2988 = sbr.rel (0) target = $region21
    $region20: #{tpu_custom_call.1} parent=1 // pred_region
      %s2990 = ssub.s32 16, 16
      %2991 = vsyncadd [#allocation5], %s2990
      %2994 = dma.smem_to_hbm [#allocation4], 16, %s4, [#allocation5]
    $region21: #{tpu_custom_call.1} parent=1 // pred_fallthru
      _
    // Predicated region
    $region22: #{tpu_custom_call.1} parent=1 // pred_check
      _
    $region23: #{tpu_custom_call.1} parent=1 // pred_check_branch
      %2996 = sbr.rel (0) target = $region25
    $region24: #{tpu_custom_call.1} parent=1 // pred_region
      %2997 = dma.done [#allocation3], 16
    $region25: #{tpu_custom_call.1} parent=1 // pred_fallthru
      _
    // Predicated region
    $region26: #{tpu_custom_call.1} parent=1 // pred_check
      _
    $region27: #{tpu_custom_call.1} parent=1 // pred_check_branch
      %2999 = sbr.rel (0) target = $region29
    $region28: #{tpu_custom_call.1} parent=1 // pred_region
      %3000 = dma.done [#allocation5], 16
    $region29: #{tpu_custom_call.1} parent=1 // pred_fallthru
      _
    %3001 = sfence
    %3002 = vsyncpa [#allocation3], 1
    %3003 = vsyncpa [#allocation5], 1

</llo_original>
